<compile_context>
chip_gen: v6e
topology: v6e:2x2x1
jax: 0.10.0
libtpu: 0.0.40
codegen_flags: <defaults>
</compile_context>

<pallas_src>
import jax
import jax.numpy as jnp
import numpy as np
from jax import lax
from jax.experimental import pallas as pl
from jax.experimental.pallas import tpu as pltpu  # noqa: F401  (imported per convention)


_DN_LAST_LAST = (((1,), (1,)), ((), ()))    # contract last dims:  A @ B^T
_DN_FIRST_FIRST = (((0,), (0,)), ((), ()))  # contract first dims: A^T @ B

# Row offsets inside the packed weight/bias slab (all starts 8-aligned).
_ROW_Q1 = 0     # rows [0, C)       : [Wq1 | bq1]
_ROW_KV1 = 8    # rows [8, 8+2C)    : [[Wk1 | bk1], [Wv1 | bv1]]  (in-dim padded 3 -> 4)
_ROW_QKV2 = 16  # rows [16, 16+3C)  : [[Wq2 | bq2], [Wk2 | bk2], [Wv2 | bv2]]
_SLAB_ROWS = 32
_SLAB_COLS = 5  # 4 weight columns + 1 bias column


def _fused_toy_model_kernel(x_ref, ctx_ref, wb_ref, o_ref):
    """Whole ToyModel forward (attn1 then attn2) for all batch elements, one step.

    Layouts (all f32):
      x_ref:   (B, C, S)   input, channel-major (free reshape of NCHW)
      ctx_ref: (B, L, Dc)  cross-attention context, as given
      wb_ref:  (32, 5)     packed weight/bias slab (see pack_params)
      o_ref:   (B*C, S)    output, channel-major -> one aligned (8, 256) store
    """
    f32 = jnp.float32
    B, C, S = x_ref.shape
    Dc = ctx_ref.shape[2]
    bias_col = _SLAB_COLS - 1

    wb = wb_ref[...]
    wq1 = wb[_ROW_Q1:_ROW_Q1 + C, 0:C]                            # (C, C)
    bq1 = wb[_ROW_Q1:_ROW_Q1 + C, bias_col:bias_col + 1]          # (C, 1)
    wkv1 = wb[_ROW_KV1:_ROW_KV1 + 2 * C, 0:Dc]                    # (2C, Dc)
    bkv1 = wb[_ROW_KV1:_ROW_KV1 + 2 * C, bias_col:bias_col + 1]   # (2C, 1)
    w2 = wb[_ROW_QKV2:_ROW_QKV2 + 3 * C, 0:C]                     # (3C, C)
    b2 = wb[_ROW_QKV2:_ROW_QKV2 + 3 * C, bias_col:bias_col + 1]   # (3C, 1)

    outs = []
    for b in range(B):  # B=2: static unroll inside the single grid step
        x_cm = x_ref[b].astype(f32)     # (C, S)
        ctx = ctx_ref[b].astype(f32)    # (L, Dc)

        # ---- attn1: cross-attention, fully channel-major ----
        q1 = jnp.dot(wq1, x_cm, preferred_element_type=f32) + bq1            # (C, S)
        kv1 = lax.dot_general(wkv1, ctx, _DN_LAST_LAST,
                              preferred_element_type=f32) + bkv1             # (2C, L)
        k1 = kv1[0:C]            # (C, L)
        v1 = kv1[C:2 * C]        # (C, L)
        # scores in (key, query) orientation -> normalizer is a (1, S) row
        s1 = lax.dot_general(k1, q1, _DN_FIRST_FIRST,
                             preferred_element_type=f32)                     # (L, S)
        e1 = jnp.exp(s1 - jnp.max(s1, axis=0, keepdims=True))
        inv1 = 1.0 / jnp.sum(e1, axis=0, keepdims=True)                      # (1, S)
        # deferred softmax normalization: scale after the PV matmul
        o1 = jnp.dot(v1, e1, preferred_element_type=f32) * inv1              # (C, S)

        # ---- attn2: self-attention over o1, single fused QKV projection ----
        qkv2 = jnp.dot(w2, o1, preferred_element_type=f32) + b2              # (3C, S)
        q2 = qkv2[0:C]           # (C, S)
        k2 = qkv2[C:2 * C]       # (C, S)
        v2 = qkv2[2 * C:3 * C]   # (C, S)
        s2 = lax.dot_general(k2, q2, _DN_FIRST_FIRST,
                             preferred_element_type=f32)                     # (S_k, S_q)
        e2 = jnp.exp(s2 - jnp.max(s2, axis=0, keepdims=True))
        inv2 = 1.0 / jnp.sum(e2, axis=0, keepdims=True)                      # (1, S_q)
        o2 = jnp.dot(v2, e2, preferred_element_type=f32) * inv2              # (C, S_q)
        outs.append(o2)

    # Single fully lane/sublane-aligned store: (B*C, S) = (8, 256).
    o_ref[...] = jnp.concatenate(outs, axis=0).astype(o_ref.dtype)


def fused_toy_model(x_cm, ctx, wb_slab):
    """x_cm: (B, C, S) channel-major; ctx: (B, L, Dc); wb_slab: (32, 5).
    Returns channel-major (B*C, S)."""
    B, C, S = x_cm.shape
    _, L, Dc = ctx.shape
    R, Wc = wb_slab.shape
    return pl.pallas_call(
        _fused_toy_model_kernel,
        out_shape=jax.ShapeDtypeStruct((B * C, S), x_cm.dtype),
        grid=(1,),  # single invocation; batch is unrolled inside the kernel
        in_specs=[
            pl.BlockSpec((B, C, S), lambda i: (0, 0, 0)),   # x, channel-major
            pl.BlockSpec((B, L, Dc), lambda i: (0, 0, 0)),  # context, as given
            pl.BlockSpec((R, Wc), lambda i: (0, 0)),        # packed weight/bias slab
        ],
        out_specs=pl.BlockSpec((B * C, S), lambda i: (0, 0)),
    )(x_cm, ctx, wb_slab)


def init_linear(key, out_dim, in_dim):
    """Deterministic nn.Linear-style init: weight (out, in), bias (out,)."""
    kw, kb = jax.random.split(key)
    bound = 1.0 / np.sqrt(in_dim)
    w = jax.random.uniform(kw, (out_dim, in_dim), jnp.float32, -bound, bound)
    b = jax.random.uniform(kb, (out_dim,), jnp.float32, -bound, bound)
    return w, b


def init_toy_model(key):
    ks = jax.random.split(key, 6)
    return {
        # n1.attn1 = ToyAttn(in_dim=4, context_dim=3)
        "attn1": {"q": init_linear(ks[0], 4, 4),
                  "k": init_linear(ks[1], 4, 3),
                  "v": init_linear(ks[2], 4, 3)},
        # attn2 = ToyAttn(in_dim=4, context_dim=4)
        "attn2": {"q": init_linear(ks[3], 4, 4),
                  "k": init_linear(ks[4], 4, 4),
                  "v": init_linear(ks[5], 4, 4)},
    }


def pack_params(params):
    """Pack the six Linears into a single (32, 5) slab:
    cols 0:4 = weights (in-dim zero-padded to 4), col 4 = bias.
    Row groups start at 8-aligned offsets 0 / 8 / 16 (see _ROW_* constants)."""
    (wq1, bq1), (wk1, bk1), (wv1, bv1) = (params["attn1"][k] for k in ("q", "k", "v"))
    (wq2, bq2), (wk2, bk2), (wv2, bv2) = (params["attn2"][k] for k in ("q", "k", "v"))

    def rows(w, b):
        wpad = jnp.pad(w, ((0, 0), (0, (_SLAB_COLS - 1) - w.shape[1])))
        return jnp.concatenate([wpad, b[:, None]], axis=1)      # (4, 5)

    zeros4 = jnp.zeros((4, _SLAB_COLS), jnp.float32)
    slab = jnp.concatenate([
        rows(wq1, bq1), zeros4,                              # rows  0:8   attn1 q
        rows(wk1, bk1), rows(wv1, bv1),                      # rows  8:16  attn1 k, v
        rows(wq2, bq2), rows(wk2, bk2), rows(wv2, bv2),      # rows 16:28  attn2 q, k, v
        zeros4,                                              # rows 28:32  pad
    ], axis=0)
    assert slab.shape == (_SLAB_ROWS, _SLAB_COLS)
    return slab


@jax.jit
def toy_model_forward(x_nchw, context, wb_slab):
    b, c, h, w = x_nchw.shape
    x_cm = x_nchw.reshape(b, c, h * w)                 # NCHW -> (B, C, S): free, no transpose
    out_2d = fused_toy_model(x_cm, context, wb_slab)   # (B*C, S), channel-major
    return out_2d.reshape(b, c, h, w)                  # free, no transpose


# ----------------------------- pure-JAX reference -----------------------------
def _ref_attn(x_seq, context, p):
    (wq, bq), (wk, bk), (wv, bv) = p["q"], p["k"], p["v"]
    q = x_seq @ wq.T + bq
    k = context @ wk.T + bk
    v = context @ wv.T + bv
    a = jax.nn.softmax(jnp.einsum("bsc,blc->bsl", q, k), axis=-1)
    return jnp.einsum("bsl,blc->bsc", a, v)


def _ref_forward(x_nchw, context, params):
    b, c, h, w = x_nchw.shape
    x_seq = jnp.transpose(x_nchw.reshape(b, c, h * w), (0, 2, 1))
    o1 = _ref_attn(x_seq, context, params["attn1"])
    o2 = _ref_attn(o1, o1, params["attn2"])
    return jnp.transpose(o2.reshape(b, h, w, c), (0, 3, 1, 2))


if __name__ == "__main__":
    key = jax.random.PRNGKey(0)
    kx, kc, kp = jax.random.split(key, 3)

    B, C, H, W = 2, 4, 16, 16
    L, CTX_DIM = 8, 3  # attn1 requires context feature dim 3

    x = jax.random.normal(kx, (B, C, H, W), jnp.float32)
    context = jax.random.normal(kc, (B, L, CTX_DIM), jnp.float32)
    params = init_toy_model(kp)

    # One-time packing of the six Linears into the kernel's weight slab.
    wb_slab = jax.block_until_ready(pack_params(params))

    out = toy_model_forward(x, context, wb_slab)
    out = jax.block_until_ready(out)

    ref = _ref_forward(x, context, params)
    assert out.shape == (B, C, H, W)
    np.testing.assert_allclose(np.asarray(out), np.asarray(ref), rtol=1e-3, atol=1e-3)

    print("KERNEL_OK")
</pallas_src>

<mosaic_0001>
module attributes {stable_mosaic.version = 11 : i64} {
  func.func @_fused_toy_model_kernel(%arg0: i32, %arg1: memref<2x4x256xf32, #tpu.memory_space<vmem>>, %arg2: memref<2x8x3xf32, #tpu.memory_space<vmem>>, %arg3: memref<32x5xf32, #tpu.memory_space<vmem>>, %arg4: memref<8x256xf32, #tpu.memory_space<vmem>>) attributes {dimension_semantics = [#tpu.dimension_semantics<arbitrary>], iteration_bounds = array<i64: 1>, scalar_prefetch = 0 : i64, scratch_operands = 0 : i64, tpu.core_type = #tpu.core_type<tc>, window_params = [{pipeline_mode = #tpu.pipeline_mode<synchronous>, transform_indices = @transform_0, window_bounds = array<i64: 2, 4, 256>}, {pipeline_mode = #tpu.pipeline_mode<synchronous>, transform_indices = @transform_1, window_bounds = array<i64: 2, 8, 3>}, {pipeline_mode = #tpu.pipeline_mode<synchronous>, transform_indices = @transform_2, window_bounds = array<i64: 32, 5>}, {pipeline_mode = #tpu.pipeline_mode<synchronous>, transform_indices = @transform_3, window_bounds = array<i64: 8, 256>}]} {
    %c0 = arith.constant 0 : index
    %c0_0 = arith.constant 0 : index
    %0 = vector.load %arg3[%c0, %c0_0] : memref<32x5xf32, #tpu.memory_space<vmem>>, vector<32x5xf32>
    %1 = vector.extract_strided_slice %0 {offsets = [0, 0], sizes = [4, 4], strides = [1, 1]} : vector<32x5xf32> to vector<4x4xf32>
    %2 = vector.extract_strided_slice %0 {offsets = [0, 4], sizes = [4, 1], strides = [1, 1]} : vector<32x5xf32> to vector<4x1xf32>
    %3 = vector.extract_strided_slice %0 {offsets = [8, 0], sizes = [8, 3], strides = [1, 1]} : vector<32x5xf32> to vector<8x3xf32>
    %4 = vector.extract_strided_slice %0 {offsets = [8, 4], sizes = [8, 1], strides = [1, 1]} : vector<32x5xf32> to vector<8x1xf32>
    %5 = vector.extract_strided_slice %0 {offsets = [16, 0], sizes = [12, 4], strides = [1, 1]} : vector<32x5xf32> to vector<12x4xf32>
    %6 = vector.extract_strided_slice %0 {offsets = [16, 4], sizes = [12, 1], strides = [1, 1]} : vector<32x5xf32> to vector<12x1xf32>
    %c0_1 = arith.constant 0 : index
    %c0_2 = arith.constant 0 : index
    %c0_3 = arith.constant 0 : index
    %7 = vector.load %arg1[%c0_1, %c0_2, %c0_3] : memref<2x4x256xf32, #tpu.memory_space<vmem>>, vector<1x4x256xf32>
    %8 = vector.shape_cast %7 : vector<1x4x256xf32> to vector<4x256xf32>
    %c0_4 = arith.constant 0 : index
    %c0_5 = arith.constant 0 : index
    %c0_6 = arith.constant 0 : index
    %9 = vector.load %arg2[%c0_4, %c0_5, %c0_6] : memref<2x8x3xf32, #tpu.memory_space<vmem>>, vector<1x8x3xf32>
    %10 = vector.shape_cast %9 : vector<1x8x3xf32> to vector<8x3xf32>
    %cst = arith.constant dense<0.000000e+00> : vector<4x256xf32>
    %11 = tpu.matmul %1, %8, %cst {dimension_numbers = #tpu.dot_dimension_numbers<[1], [0], [0], [1], [0, 0, 1, 1], [], []>} : vector<4x4xf32>, vector<4x256xf32>, vector<4x256xf32> -> vector<4x256xf32>
    %12 = vector.broadcast %2 : vector<4x1xf32> to vector<4x256xf32>
    %13 = arith.addf %11, %12 : vector<4x256xf32>
    %cst_7 = arith.constant dense<0.000000e+00> : vector<8x8xf32>
    %14 = tpu.matmul %3, %10, %cst_7 {dimension_numbers = #tpu.dot_dimension_numbers<[1], [1], [0], [0], [0, 0, 1, 0], [], []>} : vector<8x3xf32>, vector<8x3xf32>, vector<8x8xf32> -> vector<8x8xf32>
    %15 = vector.broadcast %4 : vector<8x1xf32> to vector<8x8xf32>
    %16 = arith.addf %14, %15 : vector<8x8xf32>
    %17 = vector.extract_strided_slice %16 {offsets = [0, 0], sizes = [4, 8], strides = [1, 1]} : vector<8x8xf32> to vector<4x8xf32>
    %18 = vector.extract_strided_slice %16 {offsets = [4, 0], sizes = [4, 8], strides = [1, 1]} : vector<8x8xf32> to vector<4x8xf32>
    %cst_8 = arith.constant dense<0.000000e+00> : vector<8x256xf32>
    %19 = tpu.matmul %17, %13, %cst_8 {dimension_numbers = #tpu.dot_dimension_numbers<[0], [0], [1], [1], [0, 1, 1, 1], [], []>} : vector<4x8xf32>, vector<4x256xf32>, vector<8x256xf32> -> vector<8x256xf32>
    %cst_9 = arith.constant dense<0xFF800000> : vector<256xf32>
    %20 = vector.multi_reduction <maximumf>, %19, %cst_9 [0] : vector<8x256xf32> to vector<256xf32>
    %21 = vector.shape_cast %20 : vector<256xf32> to vector<1x256xf32>
    %22 = vector.broadcast %21 : vector<1x256xf32> to vector<8x256xf32>
    %23 = arith.subf %19, %22 : vector<8x256xf32>
    %24 = math.exp %23 : vector<8x256xf32>
    %cst_10 = arith.constant dense<0.000000e+00> : vector<256xf32>
    %25 = vector.multi_reduction <add>, %24, %cst_10 [0] : vector<8x256xf32> to vector<256xf32>
    %26 = vector.shape_cast %25 : vector<256xf32> to vector<1x256xf32>
    %cst_11 = arith.constant 1.000000e+00 : f32
    %27 = vector.broadcast %cst_11 : f32 to vector<1x256xf32>
    %28 = arith.divf %27, %26 : vector<1x256xf32>
    %cst_12 = arith.constant dense<0.000000e+00> : vector<4x256xf32>
    %29 = tpu.matmul %18, %24, %cst_12 {dimension_numbers = #tpu.dot_dimension_numbers<[1], [0], [0], [1], [0, 0, 1, 1], [], []>} : vector<4x8xf32>, vector<8x256xf32>, vector<4x256xf32> -> vector<4x256xf32>
    %30 = vector.broadcast %28 : vector<1x256xf32> to vector<4x256xf32>
    %31 = arith.mulf %29, %30 : vector<4x256xf32>
    %cst_13 = arith.constant dense<0.000000e+00> : vector<12x256xf32>
    %32 = tpu.matmul %5, %31, %cst_13 {dimension_numbers = #tpu.dot_dimension_numbers<[1], [0], [0], [1], [0, 0, 1, 1], [], []>} : vector<12x4xf32>, vector<4x256xf32>, vector<12x256xf32> -> vector<12x256xf32>
    %33 = vector.broadcast %6 : vector<12x1xf32> to vector<12x256xf32>
    %34 = arith.addf %32, %33 : vector<12x256xf32>
    %35 = vector.extract_strided_slice %34 {offsets = [0, 0], sizes = [4, 256], strides = [1, 1]} : vector<12x256xf32> to vector<4x256xf32>
    %36 = vector.extract_strided_slice %34 {offsets = [4, 0], sizes = [4, 256], strides = [1, 1]} : vector<12x256xf32> to vector<4x256xf32>
    %37 = vector.extract_strided_slice %34 {offsets = [8, 0], sizes = [4, 256], strides = [1, 1]} : vector<12x256xf32> to vector<4x256xf32>
    %cst_14 = arith.constant dense<0.000000e+00> : vector<256x256xf32>
    %38 = tpu.matmul %36, %35, %cst_14 {dimension_numbers = #tpu.dot_dimension_numbers<[0], [0], [1], [1], [0, 1, 1, 1], [], []>} : vector<4x256xf32>, vector<4x256xf32>, vector<256x256xf32> -> vector<256x256xf32>
    %cst_15 = arith.constant dense<0xFF800000> : vector<256xf32>
    %39 = vector.multi_reduction <maximumf>, %38, %cst_15 [0] : vector<256x256xf32> to vector<256xf32>
    %40 = vector.shape_cast %39 : vector<256xf32> to vector<1x256xf32>
    %41 = vector.broadcast %40 : vector<1x256xf32> to vector<256x256xf32>
    %42 = arith.subf %38, %41 : vector<256x256xf32>
    %43 = math.exp %42 : vector<256x256xf32>
    %cst_16 = arith.constant dense<0.000000e+00> : vector<256xf32>
    %44 = vector.multi_reduction <add>, %43, %cst_16 [0] : vector<256x256xf32> to vector<256xf32>
    %45 = vector.shape_cast %44 : vector<256xf32> to vector<1x256xf32>
    %cst_17 = arith.constant 1.000000e+00 : f32
    %46 = vector.broadcast %cst_17 : f32 to vector<1x256xf32>
    %47 = arith.divf %46, %45 : vector<1x256xf32>
    %cst_18 = arith.constant dense<0.000000e+00> : vector<4x256xf32>
    %48 = tpu.matmul %37, %43, %cst_18 {dimension_numbers = #tpu.dot_dimension_numbers<[1], [0], [0], [1], [0, 0, 1, 1], [], []>} : vector<4x256xf32>, vector<256x256xf32>, vector<4x256xf32> -> vector<4x256xf32>
    %49 = vector.broadcast %47 : vector<1x256xf32> to vector<4x256xf32>
    %50 = arith.mulf %48, %49 : vector<4x256xf32>
    %c1 = arith.constant 1 : index
    %c0_19 = arith.constant 0 : index
    %c0_20 = arith.constant 0 : index
    %51 = vector.load %arg1[%c1, %c0_19, %c0_20] : memref<2x4x256xf32, #tpu.memory_space<vmem>>, vector<1x4x256xf32>
    %52 = vector.shape_cast %51 : vector<1x4x256xf32> to vector<4x256xf32>
    %c1_21 = arith.constant 1 : index
    %c0_22 = arith.constant 0 : index
    %c0_23 = arith.constant 0 : index
    %53 = vector.load %arg2[%c1_21, %c0_22, %c0_23] : memref<2x8x3xf32, #tpu.memory_space<vmem>>, vector<1x8x3xf32>
    %54 = vector.shape_cast %53 : vector<1x8x3xf32> to vector<8x3xf32>
    %cst_24 = arith.constant dense<0.000000e+00> : vector<4x256xf32>
    %55 = tpu.matmul %1, %52, %cst_24 {dimension_numbers = #tpu.dot_dimension_numbers<[1], [0], [0], [1], [0, 0, 1, 1], [], []>} : vector<4x4xf32>, vector<4x256xf32>, vector<4x256xf32> -> vector<4x256xf32>
    %56 = vector.broadcast %2 : vector<4x1xf32> to vector<4x256xf32>
    %57 = arith.addf %55, %56 : vector<4x256xf32>
    %cst_25 = arith.constant dense<0.000000e+00> : vector<8x8xf32>
    %58 = tpu.matmul %3, %54, %cst_25 {dimension_numbers = #tpu.dot_dimension_numbers<[1], [1], [0], [0], [0, 0, 1, 0], [], []>} : vector<8x3xf32>, vector<8x3xf32>, vector<8x8xf32> -> vector<8x8xf32>
    %59 = vector.broadcast %4 : vector<8x1xf32> to vector<8x8xf32>
    %60 = arith.addf %58, %59 : vector<8x8xf32>
    %61 = vector.extract_strided_slice %60 {offsets = [0, 0], sizes = [4, 8], strides = [1, 1]} : vector<8x8xf32> to vector<4x8xf32>
    %62 = vector.extract_strided_slice %60 {offsets = [4, 0], sizes = [4, 8], strides = [1, 1]} : vector<8x8xf32> to vector<4x8xf32>
    %cst_26 = arith.constant dense<0.000000e+00> : vector<8x256xf32>
    %63 = tpu.matmul %61, %57, %cst_26 {dimension_numbers = #tpu.dot_dimension_numbers<[0], [0], [1], [1], [0, 1, 1, 1], [], []>} : vector<4x8xf32>, vector<4x256xf32>, vector<8x256xf32> -> vector<8x256xf32>
    %cst_27 = arith.constant dense<0xFF800000> : vector<256xf32>
    %64 = vector.multi_reduction <maximumf>, %63, %cst_27 [0] : vector<8x256xf32> to vector<256xf32>
    %65 = vector.shape_cast %64 : vector<256xf32> to vector<1x256xf32>
    %66 = vector.broadcast %65 : vector<1x256xf32> to vector<8x256xf32>
    %67 = arith.subf %63, %66 : vector<8x256xf32>
    %68 = math.exp %67 : vector<8x256xf32>
    %cst_28 = arith.constant dense<0.000000e+00> : vector<256xf32>
    %69 = vector.multi_reduction <add>, %68, %cst_28 [0] : vector<8x256xf32> to vector<256xf32>
    %70 = vector.shape_cast %69 : vector<256xf32> to vector<1x256xf32>
    %cst_29 = arith.constant 1.000000e+00 : f32
    %71 = vector.broadcast %cst_29 : f32 to vector<1x256xf32>
    %72 = arith.divf %71, %70 : vector<1x256xf32>
    %cst_30 = arith.constant dense<0.000000e+00> : vector<4x256xf32>
    %73 = tpu.matmul %62, %68, %cst_30 {dimension_numbers = #tpu.dot_dimension_numbers<[1], [0], [0], [1], [0, 0, 1, 1], [], []>} : vector<4x8xf32>, vector<8x256xf32>, vector<4x256xf32> -> vector<4x256xf32>
    %74 = vector.broadcast %72 : vector<1x256xf32> to vector<4x256xf32>
    %75 = arith.mulf %73, %74 : vector<4x256xf32>
    %cst_31 = arith.constant dense<0.000000e+00> : vector<12x256xf32>
    %76 = tpu.matmul %5, %75, %cst_31 {dimension_numbers = #tpu.dot_dimension_numbers<[1], [0], [0], [1], [0, 0, 1, 1], [], []>} : vector<12x4xf32>, vector<4x256xf32>, vector<12x256xf32> -> vector<12x256xf32>
    %77 = vector.broadcast %6 : vector<12x1xf32> to vector<12x256xf32>
    %78 = arith.addf %76, %77 : vector<12x256xf32>
    %79 = vector.extract_strided_slice %78 {offsets = [0, 0], sizes = [4, 256], strides = [1, 1]} : vector<12x256xf32> to vector<4x256xf32>
    %80 = vector.extract_strided_slice %78 {offsets = [4, 0], sizes = [4, 256], strides = [1, 1]} : vector<12x256xf32> to vector<4x256xf32>
    %81 = vector.extract_strided_slice %78 {offsets = [8, 0], sizes = [4, 256], strides = [1, 1]} : vector<12x256xf32> to vector<4x256xf32>
    %cst_32 = arith.constant dense<0.000000e+00> : vector<256x256xf32>
    %82 = tpu.matmul %80, %79, %cst_32 {dimension_numbers = #tpu.dot_dimension_numbers<[0], [0], [1], [1], [0, 1, 1, 1], [], []>} : vector<4x256xf32>, vector<4x256xf32>, vector<256x256xf32> -> vector<256x256xf32>
    %cst_33 = arith.constant dense<0xFF800000> : vector<256xf32>
    %83 = vector.multi_reduction <maximumf>, %82, %cst_33 [0] : vector<256x256xf32> to vector<256xf32>
    %84 = vector.shape_cast %83 : vector<256xf32> to vector<1x256xf32>
    %85 = vector.broadcast %84 : vector<1x256xf32> to vector<256x256xf32>
    %86 = arith.subf %82, %85 : vector<256x256xf32>
    %87 = math.exp %86 : vector<256x256xf32>
    %cst_34 = arith.constant dense<0.000000e+00> : vector<256xf32>
    %88 = vector.multi_reduction <add>, %87, %cst_34 [0] : vector<256x256xf32> to vector<256xf32>
    %89 = vector.shape_cast %88 : vector<256xf32> to vector<1x256xf32>
    %cst_35 = arith.constant 1.000000e+00 : f32
    %90 = vector.broadcast %cst_35 : f32 to vector<1x256xf32>
    %91 = arith.divf %90, %89 : vector<1x256xf32>
    %cst_36 = arith.constant dense<0.000000e+00> : vector<4x256xf32>
    %92 = tpu.matmul %81, %87, %cst_36 {dimension_numbers = #tpu.dot_dimension_numbers<[1], [0], [0], [1], [0, 0, 1, 1], [], []>} : vector<4x256xf32>, vector<256x256xf32>, vector<4x256xf32> -> vector<4x256xf32>
    %93 = vector.broadcast %91 : vector<1x256xf32> to vector<4x256xf32>
    %94 = arith.mulf %92, %93 : vector<4x256xf32>
    %95 = tpu.concatenate %50, %94 in 0 : vector<4x256xf32>, vector<4x256xf32> -> vector<8x256xf32>
    %c0_37 = arith.constant 0 : index
    %c0_38 = arith.constant 0 : index
    %96 = vector.load %arg4[%c0_37, %c0_38] : memref<8x256xf32, #tpu.memory_space<vmem>>, vector<8x256xf32>
    tpu.vector_store %arg4[%c0_37, %c0_38], %95 {strides = array<i32>} : memref<8x256xf32, #tpu.memory_space<vmem>>, vector<8x256xf32>,
    return
  }
  func.func @transform_0(%arg0: i32) -> (i32, i32, i32) {
    %c0_i32 = arith.constant 0 : i32
    %c0_i32_0 = arith.constant 0 : i32
    %c0_i32_1 = arith.constant 0 : i32
    %c0_i32_2 = arith.constant 0 : i32
    return %c0_i32, %c0_i32_0, %c0_i32_1 : i32, i32, i32
  }
  func.func @transform_1(%arg0: i32) -> (i32, i32, i32) {
    %c0_i32 = arith.constant 0 : i32
    %c0_i32_0 = arith.constant 0 : i32
    %c0_i32_1 = arith.constant 0 : i32
    %c0_i32_2 = arith.constant 0 : i32
    return %c0_i32, %c0_i32_0, %c0_i32_1 : i32, i32, i32
  }
  func.func @transform_2(%arg0: i32) -> (i32, i32) {
    %c0_i32 = arith.constant 0 : i32
    %c0_i32_0 = arith.constant 0 : i32
    %c0_i32_1 = arith.constant 0 : i32
    return %c0_i32, %c0_i32_0 : i32, i32
  }
  func.func @transform_3(%arg0: i32) -> (i32, i32) {
    %c0_i32 = arith.constant 0 : i32
    %c0_i32_0 = arith.constant 0 : i32
    %c0_i32_1 = arith.constant 0 : i32
    return %c0_i32, %c0_i32_0 : i32, i32
  }
}

</mosaic_0001>

<llo_original>
// kernel: toy_model_forward.1
$region0: #{toy_model_forward.1}
  #allocation0 [shape = 'u32[]', space=smem, size = 0x4, offset = 0x4, fixed_abs, tag = 'smem constant byte address 0x4 - core index']
  #allocation1 [shape = 'u32[144,128]{1,0:T(1,128)}', space=vmem, size = 0x12000, scoped, tag = 'internal scratch']
  %s0 = inlined_call_operand.vmem [shape: f32[2,4,256], index: 0, kind: input, shape index: {}]
  %s1 = inlined_call_operand.vmem [shape: f32[2,8,3], index: 1, kind: input, shape index: {}]
  %s2 = inlined_call_operand.vmem [shape: f32[32,5], index: 2, kind: input, shape index: {}]
  %s3 = inlined_call_operand.vmem [shape: f32[8,256], index: 3, kind: output, shape index: {}]
  %s4 = sld [smem:[#allocation0]]
  $region22: #{toy_model_forward.1} parent=0
    _
  %s6 = ssub.s32 1, %s4
  %s7 = scalar_select 0, %s6, %s4
  // Predicated region
  $region2: #{toy_model_forward.1} parent=0 // pred_check
    _
  $region3: #{toy_model_forward.1} parent=0 // pred_check_branch
    %9 = sbr.rel (0) target = $region5
  $region4: #{toy_model_forward.1} parent=0 // pred_region
    _
  $region5: #{toy_model_forward.1} parent=0 // pred_fallthru
    _
  // Predicated region
  $region6: #{toy_model_forward.1} parent=0 // pred_check
    _
  $region7: #{toy_model_forward.1} parent=0 // pred_check_branch
    %11 = sbr.rel (0) target = $region9
  $region8: #{toy_model_forward.1} parent=0 // pred_region
    _
  $region9: #{toy_model_forward.1} parent=0 // pred_fallthru
    _
  // Predicated region
  $region10: #{toy_model_forward.1} parent=0 // pred_check
    _
  $region11: #{toy_model_forward.1} parent=0 // pred_check_branch
    %13 = sbr.rel (0) target = $region13
  $region12: #{toy_model_forward.1} parent=0 // pred_region
    _
  $region13: #{toy_model_forward.1} parent=0 // pred_fallthru
    _
  %v14 = vld [vmem:[%s2] sm:$0xff]
  %v15 = vld [vmem:[%s2 + $0x8] sm:$0xff]
  %v16 = vld [vmem:[%s2 + $0x10] sm:$0xff]
  %v17 = vld [vmem:[%s2 + $0x18] sm:$0xff]
  %v18 = vld [vmem:[%s0] sm:$0xff]
  %v19 = vld [vmem:[%s1] sm:$0xff]
  %21 = vset.pattern.permute.xlu0 4
  %22 = vperm.xlu0 %21, %v14
  %v23 = vpop.permute.xlu0 %22
  %v26 = vcombine.high %v18, %v18
  %vm27 = vcmask 31744
  %v28 = vsel %vm27, %v14, 0
  %vm30 = vcmask 1043456
  %v31 = vsel %vm30, %v18, 0
  %v33 = vsel %vm30, %v26, 0
  %35 = vmatprep.subr.mxu0 0.0
  %36 = vmatpush1.msra.mxu0 0.0
  %37 = vmatprep.subr.mxu0 0.0
  %38 = vmatpush1.msra.mxu0 0.0
  %39 = vmatprep.subr.mxu0 0.0
  %40 = vmatpush1.msra.mxu0 0.0
  %41 = vmatprep.subr.mxu0 0.0
  %42 = vmatpush1.msra.mxu0 0.0
  %43 = vmatprep.subr.mxu0 0.0
  %44 = vmatpush1.msra.mxu0 0.0
  %45 = vmatprep.subr.mxu0 0.0
  %46 = vmatpush1.msra.mxu0 0.0
  %47 = vmatprep.subr.mxu0 0.0
  %48 = vmatpush1.msra.mxu0 0.0
  %49 = vmatprep.subr.mxu0 0.0
  %50 = vmatpush1.msra.mxu0 0.0
  %51 = vmatprep.subr.mxu0 0.0
  %52 = vmatpush1.msra.mxu0 0.0
  %53 = vmatprep.subr.mxu0 0.0
  %54 = vmatpush1.msra.mxu0 0.0
  %55 = vmatprep.subr.mxu0 0.0
  %56 = vmatpush1.msra.mxu0 0.0
  %57 = vmatprep.subr.mxu0 0.0
  %58 = vmatpush1.msra.mxu0 0.0
  %59 = vmatprep.subr.mxu0 0.0
  %60 = vmatpush1.msra.mxu0 0.0
  %61 = vmatprep.subr.mxu0 0.0
  %62 = vmatpush1.msra.mxu0 0.0
  %63 = vmatprep.subr.mxu0 0.0
  %64 = vmatpush1.msra.mxu0 0.0
  %65 = vmatprep.subr.mxu0 %v33
  %66 = vmatpush1.msra.mxu0 %v31
  %67 = vmatprep.subr.mxu0 0.0
  %68 = vmatpush2.msra.mxu0 0.0
  %69 = vmatprep.subr.mxu0 0.0
  %70 = vmatpush2.msra.mxu0 0.0
  %71 = vmatprep.subr.mxu0 0.0
  %72 = vmatpush2.msra.mxu0 0.0
  %73 = vmatprep.subr.mxu0 0.0
  %74 = vmatpush2.msra.mxu0 0.0
  %75 = vmatprep.subr.mxu0 0.0
  %76 = vmatpush2.msra.mxu0 0.0
  %77 = vmatprep.subr.mxu0 0.0
  %78 = vmatpush2.msra.mxu0 0.0
  %79 = vmatprep.subr.mxu0 0.0
  %80 = vmatpush2.msra.mxu0 0.0
  %81 = vmatprep.subr.mxu0 0.0
  %82 = vmatpush2.msra.mxu0 0.0
  %83 = vmatprep.subr.mxu0 0.0
  %84 = vmatpush2.msra.mxu0 0.0
  %85 = vmatprep.subr.mxu0 0.0
  %86 = vmatpush2.msra.mxu0 0.0
  %87 = vmatprep.subr.mxu0 0.0
  %88 = vmatpush2.msra.mxu0 0.0
  %89 = vmatprep.subr.mxu0 0.0
  %90 = vmatpush2.msra.mxu0 0.0
  %91 = vmatprep.subr.mxu0 0.0
  %92 = vmatpush2.msra.mxu0 0.0
  %93 = vmatprep.subr.mxu0 0.0
  %94 = vmatpush2.msra.mxu0 0.0
  %95 = vmatprep.subr.mxu0 0.0
  %96 = vmatpush2.msra.mxu0 0.0
  %97 = vmatprep.subr.mxu0 0.0
  %98 = vmatpush2.msra.mxu0 0.0
  %99 = vmatprep.mubr.f32.mxu0 0.0
  %100 = vmatmul.mubr.f32.gmra.mxu0 %v28
  %v101 = vpop.f32.mrf.mxu0
  %v102 = vadd.f32 %v23, %v101
  %v103 = vpop.f32.mrf.mxu0
  %v104 = vadd.f32 %v23, %v103
  %105 = vdwg.mxu0
  %107 = vset.pattern.permute.xlu0 4
  %108 = vperm.xlu0 %107, %v15
  %v109 = vpop.permute.xlu0 %108
  %vm111 = vcmask 23552
  %v112 = vsel %vm111, %v15, 0
  %v115 = vsel %vm111, %v19, 0
  %117 = vmatprep.subr.mxu0 0.0
  %118 = vmatpush1.xpose.msra.mxu0 0.0
  %119 = vmatprep.subr.mxu0 0.0
  %120 = vmatpush1.xpose.msra.mxu0 0.0
  %121 = vmatprep.subr.mxu0 0.0
  %122 = vmatpush1.xpose.msra.mxu0 0.0
  %123 = vmatprep.subr.mxu0 0.0
  %124 = vmatpush1.xpose.msra.mxu0 0.0
  %125 = vmatprep.subr.mxu0 0.0
  %126 = vmatpush1.xpose.msra.mxu0 0.0
  %127 = vmatprep.subr.mxu0 0.0
  %128 = vmatpush1.xpose.msra.mxu0 0.0
  %129 = vmatprep.subr.mxu0 0.0
  %130 = vmatpush1.xpose.msra.mxu0 0.0
  %131 = vmatprep.subr.mxu0 0.0
  %132 = vmatpush1.xpose.msra.mxu0 0.0
  %133 = vmatprep.subr.mxu0 0.0
  %134 = vmatpush1.xpose.msra.mxu0 0.0
  %135 = vmatprep.subr.mxu0 0.0
  %136 = vmatpush1.xpose.msra.mxu0 0.0
  %137 = vmatprep.subr.mxu0 0.0
  %138 = vmatpush1.xpose.msra.mxu0 0.0
  %139 = vmatprep.subr.mxu0 0.0
  %140 = vmatpush1.xpose.msra.mxu0 0.0
  %141 = vmatprep.subr.mxu0 0.0
  %142 = vmatpush1.xpose.msra.mxu0 0.0
  %143 = vmatprep.subr.mxu0 0.0
  %144 = vmatpush1.xpose.msra.mxu0 0.0
  %145 = vmatprep.subr.mxu0 0.0
  %146 = vmatpush1.xpose.msra.mxu0 0.0
  %147 = vmatprep.subr.mxu0 0.0
  %148 = vmatpush1.xpose.msra.mxu0 %v115
  %149 = vmatprep.subr.mxu0 0.0
  %150 = vmatpush2.xpose.msra.mxu0 0.0
  %151 = vmatprep.subr.mxu0 0.0
  %152 = vmatpush2.xpose.msra.mxu0 0.0
  %153 = vmatprep.subr.mxu0 0.0
  %154 = vmatpush2.xpose.msra.mxu0 0.0
  %155 = vmatprep.subr.mxu0 0.0
  %156 = vmatpush2.xpose.msra.mxu0 0.0
  %157 = vmatprep.subr.mxu0 0.0
  %158 = vmatpush2.xpose.msra.mxu0 0.0
  %159 = vmatprep.subr.mxu0 0.0
  %160 = vmatpush2.xpose.msra.mxu0 0.0
  %161 = vmatprep.subr.mxu0 0.0
  %162 = vmatpush2.xpose.msra.mxu0 0.0
  %163 = vmatprep.subr.mxu0 0.0
  %164 = vmatpush2.xpose.msra.mxu0 0.0
  %165 = vmatprep.subr.mxu0 0.0
  %166 = vmatpush2.xpose.msra.mxu0 0.0
  %167 = vmatprep.subr.mxu0 0.0
  %168 = vmatpush2.xpose.msra.mxu0 0.0
  %169 = vmatprep.subr.mxu0 0.0
  %170 = vmatpush2.xpose.msra.mxu0 0.0
  %171 = vmatprep.subr.mxu0 0.0
  %172 = vmatpush2.xpose.msra.mxu0 0.0
  %173 = vmatprep.subr.mxu0 0.0
  %174 = vmatpush2.xpose.msra.mxu0 0.0
  %175 = vmatprep.subr.mxu0 0.0
  %176 = vmatpush2.xpose.msra.mxu0 0.0
  %177 = vmatprep.subr.mxu0 0.0
  %178 = vmatpush2.xpose.msra.mxu0 0.0
  %179 = vmatprep.subr.mxu0 0.0
  %180 = vmatpush2.xpose.msra.mxu0 0.0
  %181 = vmatprep.mubr.f32.mxu0 0.0
  %182 = vmatmul.mubr.f32.gmra.mxu0 %v112
  %v183 = vpop.f32.mrf.mxu0
  %v184 = vadd.f32 %v109, %v183
  %v185 = vpop.f32.mrf.mxu0
  %186 = vdwg.mxu0
  %187 = vxpose.xlu0.b32.start [1/16] %v184, 128
  %188 = vxpose.xlu0.b32.cont [2/16] 0.0, 128
  %189 = vxpose.xlu0.b32.cont [3/16] 0.0, 128
  %190 = vxpose.xlu0.b32.cont [4/16] 0.0, 128
  %191 = vxpose.xlu0.b32.cont [5/16] 0.0, 128
  %192 = vxpose.xlu0.b32.cont [6/16] 0.0, 128
  %193 = vxpose.xlu0.b32.cont [7/16] 0.0, 128
  %194 = vxpose.xlu0.b32.cont [8/16] 0.0, 128
  %195 = vxpose.xlu0.b32.cont [9/16] 0.0, 128
  %196 = vxpose.xlu0.b32.cont [10/16] 0.0, 128
  %197 = vxpose.xlu0.b32.cont [11/16] 0.0, 128
  %198 = vxpose.xlu0.b32.cont [12/16] 0.0, 128
  %199 = vxpose.xlu0.b32.cont [13/16] 0.0, 128
  %200 = vxpose.xlu0.b32.cont [14/16] 0.0, 128
  %201 = vxpose.xlu0.b32.cont [15/16] 0.0, 128
  %202 = vxpose.xlu0.b32.end [16/16] 0.0, 128
  %v203 = vpop.trf.xlu0
  %v204 = vpop.trf.xlu0
  %v205 = vpop.trf.xlu0
  %v206 = vpop.trf.xlu0
  %v207 = vpop.trf.xlu0
  %v208 = vpop.trf.xlu0
  %v209 = vpop.trf.xlu0
  %v210 = vpop.trf.xlu0
  %v211 = vpop.trf.xlu0
  %v212 = vpop.trf.xlu0
  %v213 = vpop.trf.xlu0
  %v214 = vpop.trf.xlu0
  %v215 = vpop.trf.xlu0
  %v216 = vpop.trf.xlu0
  %v217 = vpop.trf.xlu0
  %v218 = vpop.trf.xlu0
  %v220 = vsel %vm27, %v203, 0
  %v223 = vsel %vm30, %v102, 0
  %v226 = vsel %vm30, %v104, 0
  %228 = vmatprep.subr.mxu0 0.0
  %229 = vmatpush1.msra.mxu0 0.0
  %230 = vmatprep.subr.mxu0 0.0
  %231 = vmatpush1.msra.mxu0 0.0
  %232 = vmatprep.subr.mxu0 0.0
  %233 = vmatpush1.msra.mxu0 0.0
  %234 = vmatprep.subr.mxu0 0.0
  %235 = vmatpush1.msra.mxu0 0.0
  %236 = vmatprep.subr.mxu0 0.0
  %237 = vmatpush1.msra.mxu0 0.0
  %238 = vmatprep.subr.mxu0 0.0
  %239 = vmatpush1.msra.mxu0 0.0
  %240 = vmatprep.subr.mxu0 0.0
  %241 = vmatpush1.msra.mxu0 0.0
  %242 = vmatprep.subr.mxu0 0.0
  %243 = vmatpush1.msra.mxu0 0.0
  %244 = vmatprep.subr.mxu0 0.0
  %245 = vmatpush1.msra.mxu0 0.0
  %246 = vmatprep.subr.mxu0 0.0
  %247 = vmatpush1.msra.mxu0 0.0
  %248 = vmatprep.subr.mxu0 0.0
  %249 = vmatpush1.msra.mxu0 0.0
  %250 = vmatprep.subr.mxu0 0.0
  %251 = vmatpush1.msra.mxu0 0.0
  %252 = vmatprep.subr.mxu0 0.0
  %253 = vmatpush1.msra.mxu0 0.0
  %254 = vmatprep.subr.mxu0 0.0
  %255 = vmatpush1.msra.mxu0 0.0
  %256 = vmatprep.subr.mxu0 0.0
  %257 = vmatpush1.msra.mxu0 0.0
  %258 = vmatprep.subr.mxu0 %v226
  %259 = vmatpush1.msra.mxu0 %v223
  %260 = vmatprep.subr.mxu0 0.0
  %261 = vmatpush2.msra.mxu0 0.0
  %262 = vmatprep.subr.mxu0 0.0
  %263 = vmatpush2.msra.mxu0 0.0
  %264 = vmatprep.subr.mxu0 0.0
  %265 = vmatpush2.msra.mxu0 0.0
  %266 = vmatprep.subr.mxu0 0.0
  %267 = vmatpush2.msra.mxu0 0.0
  %268 = vmatprep.subr.mxu0 0.0
  %269 = vmatpush2.msra.mxu0 0.0
  %270 = vmatprep.subr.mxu0 0.0
  %271 = vmatpush2.msra.mxu0 0.0
  %272 = vmatprep.subr.mxu0 0.0
  %273 = vmatpush2.msra.mxu0 0.0
  %274 = vmatprep.subr.mxu0 0.0
  %275 = vmatpush2.msra.mxu0 0.0
  %276 = vmatprep.subr.mxu0 0.0
  %277 = vmatpush2.msra.mxu0 0.0
  %278 = vmatprep.subr.mxu0 0.0
  %279 = vmatpush2.msra.mxu0 0.0
  %280 = vmatprep.subr.mxu0 0.0
  %281 = vmatpush2.msra.mxu0 0.0
  %282 = vmatprep.subr.mxu0 0.0
  %283 = vmatpush2.msra.mxu0 0.0
  %284 = vmatprep.subr.mxu0 0.0
  %285 = vmatpush2.msra.mxu0 0.0
  %286 = vmatprep.subr.mxu0 0.0
  %287 = vmatpush2.msra.mxu0 0.0
  %288 = vmatprep.subr.mxu0 0.0
  %289 = vmatpush2.msra.mxu0 0.0
  %290 = vmatprep.subr.mxu0 0.0
  %291 = vmatpush2.msra.mxu0 0.0
  %292 = vmatprep.mubr.f32.mxu0 0.0
  %293 = vmatmul.mubr.f32.gmra.mxu0 %v220
  %v294 = vpop.f32.mrf.mxu0
  %v295 = vadd.f32 0.0, %v294
  %v296 = vpop.f32.mrf.mxu0
  %v297 = vadd.f32 0.0, %v296
  %298 = vdwg.mxu0
  %v299 = vrot.slane %v295, 4
  %v300 = vmax.f32 %v295, %v299
  %v301 = vrot.slane %v300, 2
  %v302 = vmax.f32 %v300, %v301
  %v303 = vrot.slane %v302, 1
  %v304 = vmax.f32 %v302, %v303
  %v305 = vrot.slane %v297, 4
  %v306 = vmax.f32 %v297, %v305
  %v307 = vrot.slane %v306, 2
  %v308 = vmax.f32 %v306, %v307
  %v309 = vrot.slane %v308, 1
  %v310 = vmax.f32 %v308, %v309
  %v311 = vsub.f32 %v295, %v304
  %v312 = vsub.f32 %v297, %v310
  %v313 = vmul.f32 %v311, 1.442695
  %v314 = vpow.pop %v313
  %v315 = vmul.f32 %v312, 1.442695
  %v316 = vpow.pop %v315
  %v317 = vrot.slane %v314, 4
  %v318 = vadd.f32 %v314, %v317
  %v319 = vrot.slane %v318, 2
  %v320 = vadd.f32 %v318, %v319
  %v321 = vrot.slane %v320, 1
  %v322 = vadd.f32 %v320, %v321
  %v323 = vrot.slane %v316, 4
  %v324 = vadd.f32 %v316, %v323
  %v325 = vrot.slane %v324, 2
  %v326 = vadd.f32 %v324, %v325
  %v327 = vrot.slane %v326, 1
  %v328 = vadd.f32 %v326, %v327
  %v329 = vrcp.pop %v322
  %v330 = vmul.f32 1.0, %v329
  %v331 = vrcp.pop %v328
  %v332 = vmul.f32 1.0, %v331
  %v334 = vrot.slane %v184, 4
  %vm335 = vcmask 64512
  %v336 = vsel %vm335, %v334, 0
  %338 = vmatprep.subr.mxu0 0.0
  %339 = vmatpush1.msra.mxu0 0.0
  %340 = vmatprep.subr.mxu0 0.0
  %341 = vmatpush1.msra.mxu0 0.0
  %342 = vmatprep.subr.mxu0 0.0
  %343 = vmatpush1.msra.mxu0 0.0
  %344 = vmatprep.subr.mxu0 0.0
  %345 = vmatpush1.msra.mxu0 0.0
  %346 = vmatprep.subr.mxu0 0.0
  %347 = vmatpush1.msra.mxu0 0.0
  %348 = vmatprep.subr.mxu0 0.0
  %349 = vmatpush1.msra.mxu0 0.0
  %350 = vmatprep.subr.mxu0 0.0
  %351 = vmatpush1.msra.mxu0 0.0
  %352 = vmatprep.subr.mxu0 0.0
  %353 = vmatpush1.msra.mxu0 0.0
  %354 = vmatprep.subr.mxu0 0.0
  %355 = vmatpush1.msra.mxu0 0.0
  %356 = vmatprep.subr.mxu0 0.0
  %357 = vmatpush1.msra.mxu0 0.0
  %358 = vmatprep.subr.mxu0 0.0
  %359 = vmatpush1.msra.mxu0 0.0
  %360 = vmatprep.subr.mxu0 0.0
  %361 = vmatpush1.msra.mxu0 0.0
  %362 = vmatprep.subr.mxu0 0.0
  %363 = vmatpush1.msra.mxu0 0.0
  %364 = vmatprep.subr.mxu0 0.0
  %365 = vmatpush1.msra.mxu0 0.0
  %366 = vmatprep.subr.mxu0 0.0
  %367 = vmatpush1.msra.mxu0 0.0
  %368 = vmatprep.subr.mxu0 %v316
  %369 = vmatpush1.msra.mxu0 %v314
  %370 = vmatprep.subr.mxu0 0.0
  %371 = vmatpush2.msra.mxu0 0.0
  %372 = vmatprep.subr.mxu0 0.0
  %373 = vmatpush2.msra.mxu0 0.0
  %374 = vmatprep.subr.mxu0 0.0
  %375 = vmatpush2.msra.mxu0 0.0
  %376 = vmatprep.subr.mxu0 0.0
  %377 = vmatpush2.msra.mxu0 0.0
  %378 = vmatprep.subr.mxu0 0.0
  %379 = vmatpush2.msra.mxu0 0.0
  %380 = vmatprep.subr.mxu0 0.0
  %381 = vmatpush2.msra.mxu0 0.0
  %382 = vmatprep.subr.mxu0 0.0
  %383 = vmatpush2.msra.mxu0 0.0
  %384 = vmatprep.subr.mxu0 0.0
  %385 = vmatpush2.msra.mxu0 0.0
  %386 = vmatprep.subr.mxu0 0.0
  %387 = vmatpush2.msra.mxu0 0.0
  %388 = vmatprep.subr.mxu0 0.0
  %389 = vmatpush2.msra.mxu0 0.0
  %390 = vmatprep.subr.mxu0 0.0
  %391 = vmatpush2.msra.mxu0 0.0
  %392 = vmatprep.subr.mxu0 0.0
  %393 = vmatpush2.msra.mxu0 0.0
  %394 = vmatprep.subr.mxu0 0.0
  %395 = vmatpush2.msra.mxu0 0.0
  %396 = vmatprep.subr.mxu0 0.0
  %397 = vmatpush2.msra.mxu0 0.0
  %398 = vmatprep.subr.mxu0 0.0
  %399 = vmatpush2.msra.mxu0 0.0
  %400 = vmatprep.subr.mxu0 0.0
  %401 = vmatpush2.msra.mxu0 0.0
  %402 = vmatprep.mubr.f32.mxu0 0.0
  %403 = vmatmul.mubr.f32.gmra.mxu0 %v336
  %v404 = vpop.f32.mrf.mxu0
  %v405 = vadd.f32 0.0, %v404
  %v406 = vpop.f32.mrf.mxu0
  %v407 = vadd.f32 0.0, %v406
  %408 = vdwg.mxu0
  %v409 = vmul.f32 %v405, %v330
  %v410 = vmul.f32 %v407, %v332
  %412 = vset.pattern.permute.xlu0 4
  %413 = vperm.xlu0 %412, %v16
  %v414 = vpop.permute.xlu0 %413
  %417 = vset.pattern.permute.xlu0 4
  %418 = vperm.xlu0 %417, %v17
  %v419 = vpop.permute.xlu0 %418
  %v421 = vsel %vm27, %v16, 0
  %v423 = vsel %vm27, %v17, 0
  %v426 = vsel %vm30, %v409, 0
  %v429 = vsel %vm30, %v410, 0
  %431 = vmatprep.subr.mxu0 0.0
  %432 = vmatpush1.msra.mxu0 0.0
  %433 = vmatprep.subr.mxu0 0.0
  %434 = vmatpush1.msra.mxu0 0.0
  %435 = vmatprep.subr.mxu0 0.0
  %436 = vmatpush1.msra.mxu0 0.0
  %437 = vmatprep.subr.mxu0 0.0
  %438 = vmatpush1.msra.mxu0 0.0
  %439 = vmatprep.subr.mxu0 0.0
  %440 = vmatpush1.msra.mxu0 0.0
  %441 = vmatprep.subr.mxu0 0.0
  %442 = vmatpush1.msra.mxu0 0.0
  %443 = vmatprep.subr.mxu0 0.0
  %444 = vmatpush1.msra.mxu0 0.0
  %445 = vmatprep.subr.mxu0 0.0
  %446 = vmatpush1.msra.mxu0 0.0
  %447 = vmatprep.subr.mxu0 0.0
  %448 = vmatpush1.msra.mxu0 0.0
  %449 = vmatprep.subr.mxu0 0.0
  %450 = vmatpush1.msra.mxu0 0.0
  %451 = vmatprep.subr.mxu0 0.0
  %452 = vmatpush1.msra.mxu0 0.0
  %453 = vmatprep.subr.mxu0 0.0
  %454 = vmatpush1.msra.mxu0 0.0
  %455 = vmatprep.subr.mxu0 0.0
  %456 = vmatpush1.msra.mxu0 0.0
  %457 = vmatprep.subr.mxu0 0.0
  %458 = vmatpush1.msra.mxu0 0.0
  %459 = vmatprep.subr.mxu0 0.0
  %460 = vmatpush1.msra.mxu0 0.0
  %461 = vmatprep.subr.mxu0 %v429
  %462 = vmatpush1.msra.mxu0 %v426
  %463 = vmatprep.subr.mxu0 0.0
  %464 = vmatpush2.msra.mxu0 0.0
  %465 = vmatprep.subr.mxu0 0.0
  %466 = vmatpush2.msra.mxu0 0.0
  %467 = vmatprep.subr.mxu0 0.0
  %468 = vmatpush2.msra.mxu0 0.0
  %469 = vmatprep.subr.mxu0 0.0
  %470 = vmatpush2.msra.mxu0 0.0
  %471 = vmatprep.subr.mxu0 0.0
  %472 = vmatpush2.msra.mxu0 0.0
  %473 = vmatprep.subr.mxu0 0.0
  %474 = vmatpush2.msra.mxu0 0.0
  %475 = vmatprep.subr.mxu0 0.0
  %476 = vmatpush2.msra.mxu0 0.0
  %477 = vmatprep.subr.mxu0 0.0
  %478 = vmatpush2.msra.mxu0 0.0
  %479 = vmatprep.subr.mxu0 0.0
  %480 = vmatpush2.msra.mxu0 0.0
  %481 = vmatprep.subr.mxu0 0.0
  %482 = vmatpush2.msra.mxu0 0.0
  %483 = vmatprep.subr.mxu0 0.0
  %484 = vmatpush2.msra.mxu0 0.0
  %485 = vmatprep.subr.mxu0 0.0
  %486 = vmatpush2.msra.mxu0 0.0
  %487 = vmatprep.subr.mxu0 0.0
  %488 = vmatpush2.msra.mxu0 0.0
  %489 = vmatprep.subr.mxu0 0.0
  %490 = vmatpush2.msra.mxu0 0.0
  %491 = vmatprep.subr.mxu0 0.0
  %492 = vmatpush2.msra.mxu0 0.0
  %493 = vmatprep.subr.mxu0 0.0
  %494 = vmatpush2.msra.mxu0 0.0
  %495 = vmatprep.mubr.f32.mxu0 0.0
  %496 = vmatmul.mubr.f32.gmra.mxu0 %v421
  %v497 = vpop.f32.mrf.mxu0
  %v498 = vadd.f32 %v414, %v497
  %v499 = vpop.f32.mrf.mxu0
  %v500 = vadd.f32 %v414, %v499
  %501 = vmatprep.mubr.f32.mxu0 0.0
  %502 = vmatmul.mubr.f32.gmra.mxu0 %v423
  %v503 = vpop.f32.mrf.mxu0
  %v504 = vadd.f32 %v419, %v503
  %v505 = vpop.f32.mrf.mxu0
  %v506 = vadd.f32 %v419, %v505
  %507 = vdwg.mxu0
  %v510 = vrot.slane %v498, 4
  %v511 = vrot.slane %v500, 4
  %514 = vxpose.xlu0.b32.start [1/16] %v510, 128
  %515 = vxpose.xlu0.b32.cont [2/16] 0.0, 128
  %516 = vxpose.xlu0.b32.cont [3/16] 0.0, 128
  %517 = vxpose.xlu0.b32.cont [4/16] 0.0, 128
  %518 = vxpose.xlu0.b32.cont [5/16] 0.0, 128
  %519 = vxpose.xlu0.b32.cont [6/16] 0.0, 128
  %520 = vxpose.xlu0.b32.cont [7/16] 0.0, 128
  %521 = vxpose.xlu0.b32.cont [8/16] 0.0, 128
  %522 = vxpose.xlu0.b32.cont [9/16] 0.0, 128
  %523 = vxpose.xlu0.b32.cont [10/16] 0.0, 128
  %524 = vxpose.xlu0.b32.cont [11/16] 0.0, 128
  %525 = vxpose.xlu0.b32.cont [12/16] 0.0, 128
  %526 = vxpose.xlu0.b32.cont [13/16] 0.0, 128
  %527 = vxpose.xlu0.b32.cont [14/16] 0.0, 128
  %528 = vxpose.xlu0.b32.cont [15/16] 0.0, 128
  %529 = vxpose.xlu0.b32.end [16/16] 0.0, 128
  %v530 = vpop.trf.xlu0
  %v531 = vpop.trf.xlu0
  %v532 = vpop.trf.xlu0
  %v533 = vpop.trf.xlu0
  %v534 = vpop.trf.xlu0
  %v535 = vpop.trf.xlu0
  %v536 = vpop.trf.xlu0
  %v537 = vpop.trf.xlu0
  %v538 = vpop.trf.xlu0
  %v539 = vpop.trf.xlu0
  %v540 = vpop.trf.xlu0
  %v541 = vpop.trf.xlu0
  %v542 = vpop.trf.xlu0
  %v543 = vpop.trf.xlu0
  %v544 = vpop.trf.xlu0
  %v545 = vpop.trf.xlu0
  %546 = vxpose.xlu0.b32.start [1/16] %v511, 128
  %547 = vxpose.xlu0.b32.cont [2/16] 0.0, 128
  %548 = vxpose.xlu0.b32.cont [3/16] 0.0, 128
  %549 = vxpose.xlu0.b32.cont [4/16] 0.0, 128
  %550 = vxpose.xlu0.b32.cont [5/16] 0.0, 128
  %551 = vxpose.xlu0.b32.cont [6/16] 0.0, 128
  %552 = vxpose.xlu0.b32.cont [7/16] 0.0, 128
  %553 = vxpose.xlu0.b32.cont [8/16] 0.0, 128
  %554 = vxpose.xlu0.b32.cont [9/16] 0.0, 128
  %555 = vxpose.xlu0.b32.cont [10/16] 0.0, 128
  %556 = vxpose.xlu0.b32.cont [11/16] 0.0, 128
  %557 = vxpose.xlu0.b32.cont [12/16] 0.0, 128
  %558 = vxpose.xlu0.b32.cont [13/16] 0.0, 128
  %559 = vxpose.xlu0.b32.cont [14/16] 0.0, 128
  %560 = vxpose.xlu0.b32.cont [15/16] 0.0, 128
  %561 = vxpose.xlu0.b32.end [16/16] 0.0, 128
  %v562 = vpop.trf.xlu0
  %v563 = vpop.trf.xlu0
  %v564 = vpop.trf.xlu0
  %v565 = vpop.trf.xlu0
  %v566 = vpop.trf.xlu0
  %v567 = vpop.trf.xlu0
  %v568 = vpop.trf.xlu0
  %v569 = vpop.trf.xlu0
  %v570 = vpop.trf.xlu0
  %v571 = vpop.trf.xlu0
  %v572 = vpop.trf.xlu0
  %v573 = vpop.trf.xlu0
  %v574 = vpop.trf.xlu0
  %v575 = vpop.trf.xlu0
  %v576 = vpop.trf.xlu0
  %v577 = vpop.trf.xlu0
  %v579 = vsel %vm27, %v530, 0
  %v582 = vsel %vm27, %v531, 0
  %v585 = vsel %vm27, %v532, 0
  %v588 = vsel %vm27, %v533, 0
  %v591 = vsel %vm27, %v534, 0
  %v594 = vsel %vm27, %v535, 0
  %v597 = vsel %vm27, %v536, 0
  %v600 = vsel %vm27, %v537, 0
  %v603 = vsel %vm27, %v538, 0
  %v606 = vsel %vm27, %v539, 0
  %v609 = vsel %vm27, %v540, 0
  %v612 = vsel %vm27, %v541, 0
  %v615 = vsel %vm27, %v542, 0
  %v618 = vsel %vm27, %v543, 0
  %v621 = vsel %vm27, %v544, 0
  %v624 = vsel %vm27, %v545, 0
  %v627 = vsel %vm27, %v562, 0
  %v630 = vsel %vm27, %v563, 0
  %v633 = vsel %vm27, %v564, 0
  %v636 = vsel %vm27, %v565, 0
  %v639 = vsel %vm27, %v566, 0
  %v642 = vsel %vm27, %v567, 0
  %v645 = vsel %vm27, %v568, 0
  %v648 = vsel %vm27, %v569, 0
  %v651 = vsel %vm27, %v570, 0
  %v654 = vsel %vm27, %v571, 0
  %v657 = vsel %vm27, %v572, 0
  %v660 = vsel %vm27, %v573, 0
  %v663 = vsel %vm27, %v574, 0
  %v666 = vsel %vm27, %v575, 0
  %v669 = vsel %vm27, %v576, 0
  %v672 = vsel %vm27, %v577, 0
  %v674 = vsel %vm30, %v498, 0
  %v676 = vsel %vm30, %v500, 0
  %678 = vmatprep.subr.mxu0 0.0
  %679 = vmatpush1.msra.mxu0 0.0
  %680 = vmatprep.subr.mxu0 0.0
  %681 = vmatpush1.msra.mxu0 0.0
  %682 = vmatprep.subr.mxu0 0.0
  %683 = vmatpush1.msra.mxu0 0.0
  %684 = vmatprep.subr.mxu0 0.0
  %685 = vmatpush1.msra.mxu0 0.0
  %686 = vmatprep.subr.mxu0 0.0
  %687 = vmatpush1.msra.mxu0 0.0
  %688 = vmatprep.subr.mxu0 0.0
  %689 = vmatpush1.msra.mxu0 0.0
  %690 = vmatprep.subr.mxu0 0.0
  %691 = vmatpush1.msra.mxu0 0.0
  %692 = vmatprep.subr.mxu0 0.0
  %693 = vmatpush1.msra.mxu0 0.0
  %694 = vmatprep.subr.mxu0 0.0
  %695 = vmatpush1.msra.mxu0 0.0
  %696 = vmatprep.subr.mxu0 0.0
  %697 = vmatpush1.msra.mxu0 0.0
  %698 = vmatprep.subr.mxu0 0.0
  %699 = vmatpush1.msra.mxu0 0.0
  %700 = vmatprep.subr.mxu0 0.0
  %701 = vmatpush1.msra.mxu0 0.0
  %702 = vmatprep.subr.mxu0 0.0
  %703 = vmatpush1.msra.mxu0 0.0
  %704 = vmatprep.subr.mxu0 0.0
  %705 = vmatpush1.msra.mxu0 0.0
  %706 = vmatprep.subr.mxu0 0.0
  %707 = vmatpush1.msra.mxu0 0.0
  %708 = vmatprep.subr.mxu0 %v676
  %709 = vmatpush1.msra.mxu0 %v674
  %710 = vmatprep.subr.mxu0 0.0
  %711 = vmatpush2.msra.mxu0 0.0
  %712 = vmatprep.subr.mxu0 0.0
  %713 = vmatpush2.msra.mxu0 0.0
  %714 = vmatprep.subr.mxu0 0.0
  %715 = vmatpush2.msra.mxu0 0.0
  %716 = vmatprep.subr.mxu0 0.0
  %717 = vmatpush2.msra.mxu0 0.0
  %718 = vmatprep.subr.mxu0 0.0
  %719 = vmatpush2.msra.mxu0 0.0
  %720 = vmatprep.subr.mxu0 0.0
  %721 = vmatpush2.msra.mxu0 0.0
  %722 = vmatprep.subr.mxu0 0.0
  %723 = vmatpush2.msra.mxu0 0.0
  %724 = vmatprep.subr.mxu0 0.0
  %725 = vmatpush2.msra.mxu0 0.0
  %726 = vmatprep.subr.mxu0 0.0
  %727 = vmatpush2.msra.mxu0 0.0
  %728 = vmatprep.subr.mxu0 0.0
  %729 = vmatpush2.msra.mxu0 0.0
  %730 = vmatprep.subr.mxu0 0.0
  %731 = vmatpush2.msra.mxu0 0.0
  %732 = vmatprep.subr.mxu0 0.0
  %733 = vmatpush2.msra.mxu0 0.0
  %734 = vmatprep.subr.mxu0 0.0
  %735 = vmatpush2.msra.mxu0 0.0
  %736 = vmatprep.subr.mxu0 0.0
  %737 = vmatpush2.msra.mxu0 0.0
  %738 = vmatprep.subr.mxu0 0.0
  %739 = vmatpush2.msra.mxu0 0.0
  %740 = vmatprep.subr.mxu0 0.0
  %741 = vmatpush2.msra.mxu0 0.0
  %742 = vmatprep.mubr.f32.mxu0 0.0
  %743 = vmatmul.mubr.f32.gmra.mxu0 %v579
  %v744 = vpop.f32.mrf.mxu0
  %v745 = vadd.f32 0.0, %v744
  %v746 = vpop.f32.mrf.mxu0
  %v747 = vadd.f32 0.0, %v746
  %748 = vmatprep.mubr.f32.mxu0 0.0
  %749 = vmatmul.mubr.f32.gmra.mxu0 %v582
  %v750 = vpop.f32.mrf.mxu0
  %v751 = vadd.f32 0.0, %v750
  %v752 = vpop.f32.mrf.mxu0
  %v753 = vadd.f32 0.0, %v752
  %754 = vmatprep.mubr.f32.mxu0 0.0
  %755 = vmatmul.mubr.f32.gmra.mxu0 %v585
  %v756 = vpop.f32.mrf.mxu0
  %v757 = vadd.f32 0.0, %v756
  %v758 = vpop.f32.mrf.mxu0
  %v759 = vadd.f32 0.0, %v758
  %760 = vmatprep.mubr.f32.mxu0 0.0
  %761 = vmatmul.mubr.f32.gmra.mxu0 %v588
  %v762 = vpop.f32.mrf.mxu0
  %v763 = vadd.f32 0.0, %v762
  %v764 = vpop.f32.mrf.mxu0
  %v765 = vadd.f32 0.0, %v764
  %766 = vmatprep.mubr.f32.mxu0 0.0
  %767 = vmatmul.mubr.f32.gmra.mxu0 %v591
  %v768 = vpop.f32.mrf.mxu0
  %v769 = vadd.f32 0.0, %v768
  %v770 = vpop.f32.mrf.mxu0
  %v771 = vadd.f32 0.0, %v770
  %772 = vmatprep.mubr.f32.mxu0 0.0
  %773 = vmatmul.mubr.f32.gmra.mxu0 %v594
  %v774 = vpop.f32.mrf.mxu0
  %v775 = vadd.f32 0.0, %v774
  %v776 = vpop.f32.mrf.mxu0
  %v777 = vadd.f32 0.0, %v776
  %778 = vmatprep.mubr.f32.mxu0 0.0
  %779 = vmatmul.mubr.f32.gmra.mxu0 %v597
  %v780 = vpop.f32.mrf.mxu0
  %v781 = vadd.f32 0.0, %v780
  %v782 = vpop.f32.mrf.mxu0
  %v783 = vadd.f32 0.0, %v782
  %784 = vmatprep.mubr.f32.mxu0 0.0
  %785 = vmatmul.mubr.f32.gmra.mxu0 %v600
  %v786 = vpop.f32.mrf.mxu0
  %v787 = vadd.f32 0.0, %v786
  %v788 = vpop.f32.mrf.mxu0
  %v789 = vadd.f32 0.0, %v788
  %790 = vmatprep.mubr.f32.mxu0 0.0
  %791 = vmatmul.mubr.f32.gmra.mxu0 %v603
  %v792 = vpop.f32.mrf.mxu0
  %v793 = vadd.f32 0.0, %v792
  %v794 = vpop.f32.mrf.mxu0
  %v795 = vadd.f32 0.0, %v794
  %796 = vmatprep.mubr.f32.mxu0 0.0
  %797 = vmatmul.mubr.f32.gmra.mxu0 %v606
  %v798 = vpop.f32.mrf.mxu0
  %v799 = vadd.f32 0.0, %v798
  %v800 = vpop.f32.mrf.mxu0
  %v801 = vadd.f32 0.0, %v800
  %802 = vmatprep.mubr.f32.mxu0 0.0
  %803 = vmatmul.mubr.f32.gmra.mxu0 %v609
  %v804 = vpop.f32.mrf.mxu0
  %v805 = vadd.f32 0.0, %v804
  %v806 = vpop.f32.mrf.mxu0
  %v807 = vadd.f32 0.0, %v806
  %808 = vmatprep.mubr.f32.mxu0 0.0
  %809 = vmatmul.mubr.f32.gmra.mxu0 %v612
  %v810 = vpop.f32.mrf.mxu0
  %v811 = vadd.f32 0.0, %v810
  %v812 = vpop.f32.mrf.mxu0
  %v813 = vadd.f32 0.0, %v812
  %814 = vmatprep.mubr.f32.mxu0 0.0
  %815 = vmatmul.mubr.f32.gmra.mxu0 %v615
  %v816 = vpop.f32.mrf.mxu0
  %v817 = vadd.f32 0.0, %v816
  %v818 = vpop.f32.mrf.mxu0
  %v819 = vadd.f32 0.0, %v818
  %820 = vmatprep.mubr.f32.mxu0 0.0
  %821 = vmatmul.mubr.f32.gmra.mxu0 %v618
  %v822 = vpop.f32.mrf.mxu0
  %v823 = vadd.f32 0.0, %v822
  %v824 = vpop.f32.mrf.mxu0
  %v825 = vadd.f32 0.0, %v824
  %826 = vmatprep.mubr.f32.mxu0 0.0
  %827 = vmatmul.mubr.f32.gmra.mxu0 %v621
  %v828 = vpop.f32.mrf.mxu0
  %v829 = vadd.f32 0.0, %v828
  %v830 = vpop.f32.mrf.mxu0
  %v831 = vadd.f32 0.0, %v830
  %832 = vmatprep.mubr.f32.mxu0 0.0
  %833 = vmatmul.mubr.f32.gmra.mxu0 %v624
  %v834 = vpop.f32.mrf.mxu0
  %v835 = vadd.f32 0.0, %v834
  %v836 = vpop.f32.mrf.mxu0
  %v837 = vadd.f32 0.0, %v836
  %838 = vmatprep.mubr.f32.mxu0 0.0
  %839 = vmatmul.mubr.f32.gmra.mxu0 %v627
  %v840 = vpop.f32.mrf.mxu0
  %v841 = vadd.f32 0.0, %v840
  %v842 = vpop.f32.mrf.mxu0
  %v843 = vadd.f32 0.0, %v842
  %844 = vmatprep.mubr.f32.mxu0 0.0
  %845 = vmatmul.mubr.f32.gmra.mxu0 %v630
  %v846 = vpop.f32.mrf.mxu0
  %v847 = vadd.f32 0.0, %v846
  %v848 = vpop.f32.mrf.mxu0
  %v849 = vadd.f32 0.0, %v848
  %850 = vmatprep.mubr.f32.mxu0 0.0
  %851 = vmatmul.mubr.f32.gmra.mxu0 %v633
  %v852 = vpop.f32.mrf.mxu0
  %v853 = vadd.f32 0.0, %v852
  %v854 = vpop.f32.mrf.mxu0
  %v855 = vadd.f32 0.0, %v854
  %856 = vmatprep.mubr.f32.mxu0 0.0
  %857 = vmatmul.mubr.f32.gmra.mxu0 %v636
  %v858 = vpop.f32.mrf.mxu0
  %v859 = vadd.f32 0.0, %v858
  %v860 = vpop.f32.mrf.mxu0
  %v861 = vadd.f32 0.0, %v860
  %862 = vmatprep.mubr.f32.mxu0 0.0
  %863 = vmatmul.mubr.f32.gmra.mxu0 %v639
  %v864 = vpop.f32.mrf.mxu0
  %v865 = vadd.f32 0.0, %v864
  %v866 = vpop.f32.mrf.mxu0
  %v867 = vadd.f32 0.0, %v866
  %868 = vmatprep.mubr.f32.mxu0 0.0
  %869 = vmatmul.mubr.f32.gmra.mxu0 %v642
  %v870 = vpop.f32.mrf.mxu0
  %v871 = vadd.f32 0.0, %v870
  %v872 = vpop.f32.mrf.mxu0
  %v873 = vadd.f32 0.0, %v872
  %874 = vmatprep.mubr.f32.mxu0 0.0
  %875 = vmatmul.mubr.f32.gmra.mxu0 %v645
  %v876 = vpop.f32.mrf.mxu0
  %v877 = vadd.f32 0.0, %v876
  %v878 = vpop.f32.mrf.mxu0
  %v879 = vadd.f32 0.0, %v878
  %880 = vmatprep.mubr.f32.mxu0 0.0
  %881 = vmatmul.mubr.f32.gmra.mxu0 %v648
  %v882 = vpop.f32.mrf.mxu0
  %v883 = vadd.f32 0.0, %v882
  %v884 = vpop.f32.mrf.mxu0
  %v885 = vadd.f32 0.0, %v884
  %886 = vmatprep.mubr.f32.mxu0 0.0
  %887 = vmatmul.mubr.f32.gmra.mxu0 %v651
  %v888 = vpop.f32.mrf.mxu0
  %v889 = vadd.f32 0.0, %v888
  %v890 = vpop.f32.mrf.mxu0
  %v891 = vadd.f32 0.0, %v890
  %892 = vmatprep.mubr.f32.mxu0 0.0
  %893 = vmatmul.mubr.f32.gmra.mxu0 %v654
  %v894 = vpop.f32.mrf.mxu0
  %v895 = vadd.f32 0.0, %v894
  %v896 = vpop.f32.mrf.mxu0
  %v897 = vadd.f32 0.0, %v896
  %898 = vmatprep.mubr.f32.mxu0 0.0
  %899 = vmatmul.mubr.f32.gmra.mxu0 %v657
  %v900 = vpop.f32.mrf.mxu0
  %v901 = vadd.f32 0.0, %v900
  %v902 = vpop.f32.mrf.mxu0
  %v903 = vadd.f32 0.0, %v902
  %904 = vmatprep.mubr.f32.mxu0 0.0
  %905 = vmatmul.mubr.f32.gmra.mxu0 %v660
  %v906 = vpop.f32.mrf.mxu0
  %v907 = vadd.f32 0.0, %v906
  %v908 = vpop.f32.mrf.mxu0
  %v909 = vadd.f32 0.0, %v908
  %910 = vmatprep.mubr.f32.mxu0 0.0
  %911 = vmatmul.mubr.f32.gmra.mxu0 %v663
  %v912 = vpop.f32.mrf.mxu0
  %v913 = vadd.f32 0.0, %v912
  %v914 = vpop.f32.mrf.mxu0
  %v915 = vadd.f32 0.0, %v914
  %916 = vmatprep.mubr.f32.mxu0 0.0
  %917 = vmatmul.mubr.f32.gmra.mxu0 %v666
  %v918 = vpop.f32.mrf.mxu0
  %v919 = vadd.f32 0.0, %v918
  %v920 = vpop.f32.mrf.mxu0
  %v921 = vadd.f32 0.0, %v920
  %922 = vmatprep.mubr.f32.mxu0 0.0
  %923 = vmatmul.mubr.f32.gmra.mxu0 %v669
  %v924 = vpop.f32.mrf.mxu0
  %v925 = vadd.f32 0.0, %v924
  %v926 = vpop.f32.mrf.mxu0
  %v927 = vadd.f32 0.0, %v926
  %928 = vmatprep.mubr.f32.mxu0 0.0
  %929 = vmatmul.mubr.f32.gmra.mxu0 %v672
  %v930 = vpop.f32.mrf.mxu0
  %v931 = vadd.f32 0.0, %v930
  %v932 = vpop.f32.mrf.mxu0
  %v933 = vadd.f32 0.0, %v932
  %934 = vdwg.mxu0
  %v935 = vmax.f32 %v745, %v757
  %v936 = vmax.f32 %v751, %v763
  %v937 = vmax.f32 %v935, %v769
  %v938 = vmax.f32 %v936, %v775
  %v939 = vmax.f32 %v937, %v781
  %v940 = vmax.f32 %v938, %v787
  %v941 = vmax.f32 %v939, %v793
  %v942 = vmax.f32 %v940, %v799
  %v943 = vmax.f32 %v941, %v805
  %v944 = vmax.f32 %v942, %v811
  %v945 = vmax.f32 %v943, %v817
  %v946 = vmax.f32 %v944, %v823
  %v947 = vmax.f32 %v945, %v829
  %v948 = vmax.f32 %v946, %v835
  %v949 = vmax.f32 %v947, %v841
  %v950 = vmax.f32 %v948, %v847
  %v951 = vmax.f32 %v949, %v853
  %v952 = vmax.f32 %v950, %v859
  %v953 = vmax.f32 %v951, %v865
  %v954 = vmax.f32 %v952, %v871
  %v955 = vmax.f32 %v953, %v877
  %v956 = vmax.f32 %v954, %v883
  %v957 = vmax.f32 %v955, %v889
  %v958 = vmax.f32 %v956, %v895
  %v959 = vmax.f32 %v957, %v901
  %v960 = vmax.f32 %v958, %v907
  %v961 = vmax.f32 %v959, %v913
  %v962 = vmax.f32 %v960, %v919
  %v963 = vmax.f32 %v961, %v925
  %v964 = vmax.f32 %v962, %v931
  %v965 = vmax.f32 %v963, %v964
  %v966 = vrot.slane %v965, 4
  %v967 = vmax.f32 %v965, %v966
  %v968 = vrot.slane %v967, 2
  %v969 = vmax.f32 %v967, %v968
  %v970 = vrot.slane %v969, 1
  %v971 = vmax.f32 %v969, %v970
  %v972 = vmax.f32 %v747, %v759
  %v973 = vmax.f32 %v753, %v765
  %v974 = vmax.f32 %v972, %v771
  %v975 = vmax.f32 %v973, %v777
  %v976 = vmax.f32 %v974, %v783
  %v977 = vmax.f32 %v975, %v789
  %v978 = vmax.f32 %v976, %v795
  %v979 = vmax.f32 %v977, %v801
  %v980 = vmax.f32 %v978, %v807
  %v981 = vmax.f32 %v979, %v813
  %v982 = vmax.f32 %v980, %v819
  %v983 = vmax.f32 %v981, %v825
  %v984 = vmax.f32 %v982, %v831
  %v985 = vmax.f32 %v983, %v837
  %v986 = vmax.f32 %v984, %v843
  %v987 = vmax.f32 %v985, %v849
  %v988 = vmax.f32 %v986, %v855
  %v989 = vmax.f32 %v987, %v861
  %v990 = vmax.f32 %v988, %v867
  %v991 = vmax.f32 %v989, %v873
  %v992 = vmax.f32 %v990, %v879
  %v993 = vmax.f32 %v991, %v885
  %v994 = vmax.f32 %v992, %v891
  %v995 = vmax.f32 %v993, %v897
  %v996 = vmax.f32 %v994, %v903
  %v997 = vmax.f32 %v995, %v909
  %v998 = vmax.f32 %v996, %v915
  %v999 = vmax.f32 %v997, %v921
  %v1000 = vmax.f32 %v998, %v927
  %v1001 = vmax.f32 %v999, %v933
  %v1002 = vmax.f32 %v1000, %v1001
  %v1003 = vrot.slane %v1002, 4
  %v1004 = vmax.f32 %v1002, %v1003
  %v1005 = vrot.slane %v1004, 2
  %v1006 = vmax.f32 %v1004, %v1005
  %v1007 = vrot.slane %v1006, 1
  %v1008 = vmax.f32 %v1006, %v1007
  %v1009 = vsub.f32 %v745, %v971
  %v1010 = vsub.f32 %v747, %v1008
  %v1011 = vsub.f32 %v751, %v971
  %v1012 = vsub.f32 %v753, %v1008
  %v1013 = vsub.f32 %v757, %v971
  %v1014 = vsub.f32 %v759, %v1008
  %v1015 = vsub.f32 %v763, %v971
  %v1016 = vsub.f32 %v765, %v1008
  %v1017 = vsub.f32 %v769, %v971
  %v1018 = vsub.f32 %v771, %v1008
  %v1019 = vsub.f32 %v775, %v971
  %v1020 = vsub.f32 %v777, %v1008
  %v1021 = vsub.f32 %v781, %v971
  %v1022 = vsub.f32 %v783, %v1008
  %v1023 = vsub.f32 %v787, %v971
  %v1024 = vsub.f32 %v789, %v1008
  %v1025 = vsub.f32 %v793, %v971
  %v1026 = vsub.f32 %v795, %v1008
  %v1027 = vsub.f32 %v799, %v971
  %v1028 = vsub.f32 %v801, %v1008
  %v1029 = vsub.f32 %v805, %v971
  %v1030 = vsub.f32 %v807, %v1008
  %v1031 = vsub.f32 %v811, %v971
  %v1032 = vsub.f32 %v813, %v1008
  %v1033 = vsub.f32 %v817, %v971
  %v1034 = vsub.f32 %v819, %v1008
  %v1035 = vsub.f32 %v823, %v971
  %v1036 = vsub.f32 %v825, %v1008
  %v1037 = vsub.f32 %v829, %v971
  %v1038 = vsub.f32 %v831, %v1008
  %v1039 = vsub.f32 %v835, %v971
  %v1040 = vsub.f32 %v837, %v1008
  %v1041 = vsub.f32 %v841, %v971
  %v1042 = vsub.f32 %v843, %v1008
  %v1043 = vsub.f32 %v847, %v971
  %v1044 = vsub.f32 %v849, %v1008
  %v1045 = vsub.f32 %v853, %v971
  %v1046 = vsub.f32 %v855, %v1008
  %v1047 = vsub.f32 %v859, %v971
  %v1048 = vsub.f32 %v861, %v1008
  %v1049 = vsub.f32 %v865, %v971
  %v1050 = vsub.f32 %v867, %v1008
  %v1051 = vsub.f32 %v871, %v971
  %v1052 = vsub.f32 %v873, %v1008
  %v1053 = vsub.f32 %v877, %v971
  %v1054 = vsub.f32 %v879, %v1008
  %v1055 = vsub.f32 %v883, %v971
  %v1056 = vsub.f32 %v885, %v1008
  %v1057 = vsub.f32 %v889, %v971
  %v1058 = vsub.f32 %v891, %v1008
  %v1059 = vsub.f32 %v895, %v971
  %v1060 = vsub.f32 %v897, %v1008
  %v1061 = vsub.f32 %v901, %v971
  %v1062 = vsub.f32 %v903, %v1008
  %v1063 = vsub.f32 %v907, %v971
  %v1064 = vsub.f32 %v909, %v1008
  %v1065 = vsub.f32 %v913, %v971
  %v1066 = vsub.f32 %v915, %v1008
  %v1067 = vsub.f32 %v919, %v971
  %v1068 = vsub.f32 %v921, %v1008
  %v1069 = vsub.f32 %v925, %v971
  %v1070 = vsub.f32 %v927, %v1008
  %v1071 = vsub.f32 %v931, %v971
  %v1072 = vsub.f32 %v933, %v1008
  %v1073 = vmul.f32 %v1009, 1.442695
  %v1074 = vpow.pop %v1073
  %v1075 = vmul.f32 %v1010, 1.442695
  %v1076 = vpow.pop %v1075
  %v1077 = vmul.f32 %v1011, 1.442695
  %v1078 = vpow.pop %v1077
  %v1079 = vmul.f32 %v1012, 1.442695
  %v1080 = vpow.pop %v1079
  %v1081 = vmul.f32 %v1013, 1.442695
  %v1082 = vpow.pop %v1081
  %v1083 = vmul.f32 %v1014, 1.442695
  %v1084 = vpow.pop %v1083
  %v1085 = vmul.f32 %v1015, 1.442695
  %v1086 = vpow.pop %v1085
  %v1087 = vmul.f32 %v1016, 1.442695
  %v1088 = vpow.pop %v1087
  %v1089 = vmul.f32 %v1017, 1.442695
  %v1090 = vpow.pop %v1089
  %v1091 = vmul.f32 %v1018, 1.442695
  %v1092 = vpow.pop %v1091
  %v1093 = vmul.f32 %v1019, 1.442695
  %v1094 = vpow.pop %v1093
  %v1095 = vmul.f32 %v1020, 1.442695
  %v1096 = vpow.pop %v1095
  %v1097 = vmul.f32 %v1021, 1.442695
  %v1098 = vpow.pop %v1097
  %v1099 = vmul.f32 %v1022, 1.442695
  %v1100 = vpow.pop %v1099
  %v1101 = vmul.f32 %v1023, 1.442695
  %v1102 = vpow.pop %v1101
  %v1103 = vmul.f32 %v1024, 1.442695
  %v1104 = vpow.pop %v1103
  %v1105 = vmul.f32 %v1025, 1.442695
  %v1106 = vpow.pop %v1105
  %v1107 = vmul.f32 %v1026, 1.442695
  %v1108 = vpow.pop %v1107
  %v1109 = vmul.f32 %v1027, 1.442695
  %v1110 = vpow.pop %v1109
  %v1111 = vmul.f32 %v1028, 1.442695
  %v1112 = vpow.pop %v1111
  %v1113 = vmul.f32 %v1029, 1.442695
  %v1114 = vpow.pop %v1113
  %v1115 = vmul.f32 %v1030, 1.442695
  %v1116 = vpow.pop %v1115
  %v1117 = vmul.f32 %v1031, 1.442695
  %v1118 = vpow.pop %v1117
  %v1119 = vmul.f32 %v1032, 1.442695
  %v1120 = vpow.pop %v1119
  %v1121 = vmul.f32 %v1033, 1.442695
  %v1122 = vpow.pop %v1121
  %v1123 = vmul.f32 %v1034, 1.442695
  %v1124 = vpow.pop %v1123
  %v1125 = vmul.f32 %v1035, 1.442695
  %v1126 = vpow.pop %v1125
  %v1127 = vmul.f32 %v1036, 1.442695
  %v1128 = vpow.pop %v1127
  %v1129 = vmul.f32 %v1037, 1.442695
  %v1130 = vpow.pop %v1129
  %v1131 = vmul.f32 %v1038, 1.442695
  %v1132 = vpow.pop %v1131
  %v1133 = vmul.f32 %v1039, 1.442695
  %v1134 = vpow.pop %v1133
  %v1135 = vmul.f32 %v1040, 1.442695
  %v1136 = vpow.pop %v1135
  %v1137 = vmul.f32 %v1041, 1.442695
  %v1138 = vpow.pop %v1137
  %v1139 = vmul.f32 %v1042, 1.442695
  %v1140 = vpow.pop %v1139
  %v1141 = vmul.f32 %v1043, 1.442695
  %v1142 = vpow.pop %v1141
  %v1143 = vmul.f32 %v1044, 1.442695
  %v1144 = vpow.pop %v1143
  %v1145 = vmul.f32 %v1045, 1.442695
  %v1146 = vpow.pop %v1145
  %v1147 = vmul.f32 %v1046, 1.442695
  %v1148 = vpow.pop %v1147
  %v1149 = vmul.f32 %v1047, 1.442695
  %v1150 = vpow.pop %v1149
  %v1151 = vmul.f32 %v1048, 1.442695
  %v1152 = vpow.pop %v1151
  %v1153 = vmul.f32 %v1049, 1.442695
  %v1154 = vpow.pop %v1153
  %v1155 = vmul.f32 %v1050, 1.442695
  %v1156 = vpow.pop %v1155
  %v1157 = vmul.f32 %v1051, 1.442695
  %v1158 = vpow.pop %v1157
  %v1159 = vmul.f32 %v1052, 1.442695
  %v1160 = vpow.pop %v1159
  %v1161 = vmul.f32 %v1053, 1.442695
  %v1162 = vpow.pop %v1161
  %v1163 = vmul.f32 %v1054, 1.442695
  %v1164 = vpow.pop %v1163
  %v1165 = vmul.f32 %v1055, 1.442695
  %v1166 = vpow.pop %v1165
  %v1167 = vmul.f32 %v1056, 1.442695
  %v1168 = vpow.pop %v1167
  %v1169 = vmul.f32 %v1057, 1.442695
  %v1170 = vpow.pop %v1169
  %v1171 = vmul.f32 %v1058, 1.442695
  %v1172 = vpow.pop %v1171
  %v1173 = vmul.f32 %v1059, 1.442695
  %v1174 = vpow.pop %v1173
  %v1175 = vmul.f32 %v1060, 1.442695
  %v1176 = vpow.pop %v1175
  %v1177 = vmul.f32 %v1061, 1.442695
  %v1178 = vpow.pop %v1177
  %v1179 = vmul.f32 %v1062, 1.442695
  %v1180 = vpow.pop %v1179
  %v1181 = vmul.f32 %v1063, 1.442695
  %v1182 = vpow.pop %v1181
  %v1183 = vmul.f32 %v1064, 1.442695
  %v1184 = vpow.pop %v1183
  %v1185 = vmul.f32 %v1065, 1.442695
  %v1186 = vpow.pop %v1185
  %v1187 = vmul.f32 %v1066, 1.442695
  %v1188 = vpow.pop %v1187
  %v1189 = vmul.f32 %v1067, 1.442695
  %v1190 = vpow.pop %v1189
  %v1191 = vmul.f32 %v1068, 1.442695
  %v1192 = vpow.pop %v1191
  %v1193 = vmul.f32 %v1069, 1.442695
  %v1194 = vpow.pop %v1193
  %v1195 = vmul.f32 %v1070, 1.442695
  %v1196 = vpow.pop %v1195
  %v1197 = vmul.f32 %v1071, 1.442695
  %v1198 = vpow.pop %v1197
  %v1199 = vmul.f32 %v1072, 1.442695
  %v1200 = vpow.pop %v1199
  %v1201 = vadd.f32 %v1074, %v1078
  %v1202 = vadd.f32 %v1201, %v1082
  %v1203 = vadd.f32 %v1202, %v1086
  %v1204 = vadd.f32 %v1203, %v1090
  %v1205 = vadd.f32 %v1204, %v1094
  %v1206 = vadd.f32 %v1205, %v1098
  %v1207 = vadd.f32 %v1206, %v1102
  %v1208 = vadd.f32 %v1207, %v1106
  %v1209 = vadd.f32 %v1208, %v1110
  %v1210 = vadd.f32 %v1209, %v1114
  %v1211 = vadd.f32 %v1210, %v1118
  %v1212 = vadd.f32 %v1211, %v1122
  %v1213 = vadd.f32 %v1212, %v1126
  %v1214 = vadd.f32 %v1213, %v1130
  %v1215 = vadd.f32 %v1214, %v1134
  %v1216 = vadd.f32 %v1215, %v1138
  %v1217 = vadd.f32 %v1216, %v1142
  %v1218 = vadd.f32 %v1217, %v1146
  %v1219 = vadd.f32 %v1218, %v1150
  %v1220 = vadd.f32 %v1219, %v1154
  %v1221 = vadd.f32 %v1220, %v1158
  %v1222 = vadd.f32 %v1221, %v1162
  %v1223 = vadd.f32 %v1222, %v1166
  %v1224 = vadd.f32 %v1223, %v1170
  %v1225 = vadd.f32 %v1224, %v1174
  %v1226 = vadd.f32 %v1225, %v1178
  %v1227 = vadd.f32 %v1226, %v1182
  %v1228 = vadd.f32 %v1227, %v1186
  %v1229 = vadd.f32 %v1228, %v1190
  %v1230 = vadd.f32 %v1229, %v1194
  %v1231 = vadd.f32 %v1230, %v1198
  %v1232 = vrot.slane %v1231, 4
  %v1233 = vadd.f32 %v1231, %v1232
  %v1234 = vrot.slane %v1233, 2
  %v1235 = vadd.f32 %v1233, %v1234
  %v1236 = vrot.slane %v1235, 1
  %v1237 = vadd.f32 %v1235, %v1236
  %v1238 = vadd.f32 %v1076, %v1080
  %v1239 = vadd.f32 %v1238, %v1084
  %v1240 = vadd.f32 %v1239, %v1088
  %v1241 = vadd.f32 %v1240, %v1092
  %v1242 = vadd.f32 %v1241, %v1096
  %v1243 = vadd.f32 %v1242, %v1100
  %v1244 = vadd.f32 %v1243, %v1104
  %v1245 = vadd.f32 %v1244, %v1108
  %v1246 = vadd.f32 %v1245, %v1112
  %v1247 = vadd.f32 %v1246, %v1116
  %v1248 = vadd.f32 %v1247, %v1120
  %v1249 = vadd.f32 %v1248, %v1124
  %v1250 = vadd.f32 %v1249, %v1128
  %v1251 = vadd.f32 %v1250, %v1132
  %v1252 = vadd.f32 %v1251, %v1136
  %v1253 = vadd.f32 %v1252, %v1140
  %v1254 = vadd.f32 %v1253, %v1144
  %v1255 = vadd.f32 %v1254, %v1148
  %v1256 = vadd.f32 %v1255, %v1152
  %v1257 = vadd.f32 %v1256, %v1156
  %v1258 = vadd.f32 %v1257, %v1160
  %v1259 = vadd.f32 %v1258, %v1164
  %v1260 = vadd.f32 %v1259, %v1168
  %v1261 = vadd.f32 %v1260, %v1172
  %v1262 = vadd.f32 %v1261, %v1176
  %v1263 = vadd.f32 %v1262, %v1180
  %v1264 = vadd.f32 %v1263, %v1184
  %v1265 = vadd.f32 %v1264, %v1188
  %v1266 = vadd.f32 %v1265, %v1192
  %v1267 = vadd.f32 %v1266, %v1196
  %v1268 = vadd.f32 %v1267, %v1200
  %v1269 = vrot.slane %v1268, 4
  %v1270 = vadd.f32 %v1268, %v1269
  %v1271 = vrot.slane %v1270, 2
  %v1272 = vadd.f32 %v1270, %v1271
  %v1273 = vrot.slane %v1272, 1
  %v1274 = vadd.f32 %v1272, %v1273
  %v1275 = vrcp.pop %v1237
  %v1276 = vmul.f32 1.0, %v1275
  %v1277 = vrcp.pop %v1274
  %v1278 = vmul.f32 1.0, %v1277
  %1279 = vmatprep.subr.mxu0 %v1136
  %1280 = vmatpush1.msra.mxu0 %v1134
  %1281 = vmatprep.subr.mxu0 %v1132
  %1282 = vmatpush1.msra.mxu0 %v1130
  %1283 = vmatprep.subr.mxu0 %v1128
  %1284 = vmatpush1.msra.mxu0 %v1126
  %1285 = vmatprep.subr.mxu0 %v1124
  %1286 = vmatpush1.msra.mxu0 %v1122
  %1287 = vmatprep.subr.mxu0 %v1120
  %1288 = vmatpush1.msra.mxu0 %v1118
  %1289 = vmatprep.subr.mxu0 %v1116
  %1290 = vmatpush1.msra.mxu0 %v1114
  %1291 = vmatprep.subr.mxu0 %v1112
  %1292 = vmatpush1.msra.mxu0 %v1110
  %1293 = vmatprep.subr.mxu0 %v1108
  %1294 = vmatpush1.msra.mxu0 %v1106
  %1295 = vmatprep.subr.mxu0 %v1104
  %1296 = vmatpush1.msra.mxu0 %v1102
  %1297 = vmatprep.subr.mxu0 %v1100
  %1298 = vmatpush1.msra.mxu0 %v1098
  %1299 = vmatprep.subr.mxu0 %v1096
  %1300 = vmatpush1.msra.mxu0 %v1094
  %1301 = vmatprep.subr.mxu0 %v1092
  %1302 = vmatpush1.msra.mxu0 %v1090
  %1303 = vmatprep.subr.mxu0 %v1088
  %1304 = vmatpush1.msra.mxu0 %v1086
  %1305 = vmatprep.subr.mxu0 %v1084
  %1306 = vmatpush1.msra.mxu0 %v1082
  %1307 = vmatprep.subr.mxu0 %v1080
  %1308 = vmatpush1.msra.mxu0 %v1078
  %1309 = vmatprep.subr.mxu0 %v1076
  %1310 = vmatpush1.msra.mxu0 %v1074
  %1311 = vmatprep.subr.mxu0 %v1200
  %1312 = vmatpush2.msra.mxu0 %v1198
  %1313 = vmatprep.subr.mxu0 %v1196
  %1314 = vmatpush2.msra.mxu0 %v1194
  %1315 = vmatprep.subr.mxu0 %v1192
  %1316 = vmatpush2.msra.mxu0 %v1190
  %1317 = vmatprep.subr.mxu0 %v1188
  %1318 = vmatpush2.msra.mxu0 %v1186
  %1319 = vmatprep.subr.mxu0 %v1184
  %1320 = vmatpush2.msra.mxu0 %v1182
  %1321 = vmatprep.subr.mxu0 %v1180
  %1322 = vmatpush2.msra.mxu0 %v1178
  %1323 = vmatprep.subr.mxu0 %v1176
  %1324 = vmatpush2.msra.mxu0 %v1174
  %1325 = vmatprep.subr.mxu0 %v1172
  %1326 = vmatpush2.msra.mxu0 %v1170
  %1327 = vmatprep.subr.mxu0 %v1168
  %1328 = vmatpush2.msra.mxu0 %v1166
  %1329 = vmatprep.subr.mxu0 %v1164
  %1330 = vmatpush2.msra.mxu0 %v1162
  %1331 = vmatprep.subr.mxu0 %v1160
  %1332 = vmatpush2.msra.mxu0 %v1158
  %1333 = vmatprep.subr.mxu0 %v1156
  %1334 = vmatpush2.msra.mxu0 %v1154
  %1335 = vmatprep.subr.mxu0 %v1152
  %1336 = vmatpush2.msra.mxu0 %v1150
  %1337 = vmatprep.subr.mxu0 %v1148
  %1338 = vmatpush2.msra.mxu0 %v1146
  %1339 = vmatprep.subr.mxu0 %v1144
  %1340 = vmatpush2.msra.mxu0 %v1142
  %1341 = vmatprep.subr.mxu0 %v1140
  %1342 = vmatpush2.msra.mxu0 %v1138
  %1343 = vmatprep.mubr.f32.mxu0 %v506
  %1344 = vmatmul.mubr.f32.gmra.mxu0 %v504
  %v1345 = vpop.f32.mrf.mxu0
  %v1346 = vadd.f32 0.0, %v1345
  %v1347 = vpop.f32.mrf.mxu0
  %v1348 = vadd.f32 0.0, %v1347
  %1349 = vdwg.mxu0
  %v1350 = vmul.f32 %v1346, %v1276
  %v1351 = vmul.f32 %v1348, %v1278
  %s1352 = scalar_lea.vmem %s0, 8
  %v1353 = vld [vmem:[%s1352] sm:$0xff]
  %s1354 = scalar_lea.vmem %s1, 8
  %v1355 = vld [vmem:[%s1354] sm:$0xff]
  %v1357 = vcombine.high %v1353, %v1353
  %v1358 = vsel %vm30, %v1353, 0
  %v1360 = vsel %vm30, %v1357, 0
  %1362 = vmatprep.subr.mxu0 0.0
  %1363 = vmatpush1.msra.mxu0 0.0
  %1364 = vmatprep.subr.mxu0 0.0
  %1365 = vmatpush1.msra.mxu0 0.0
  %1366 = vmatprep.subr.mxu0 0.0
  %1367 = vmatpush1.msra.mxu0 0.0
  %1368 = vmatprep.subr.mxu0 0.0
  %1369 = vmatpush1.msra.mxu0 0.0
  %1370 = vmatprep.subr.mxu0 0.0
  %1371 = vmatpush1.msra.mxu0 0.0
  %1372 = vmatprep.subr.mxu0 0.0
  %1373 = vmatpush1.msra.mxu0 0.0
  %1374 = vmatprep.subr.mxu0 0.0
  %1375 = vmatpush1.msra.mxu0 0.0
  %1376 = vmatprep.subr.mxu0 0.0
  %1377 = vmatpush1.msra.mxu0 0.0
  %1378 = vmatprep.subr.mxu0 0.0
  %1379 = vmatpush1.msra.mxu0 0.0
  %1380 = vmatprep.subr.mxu0 0.0
  %1381 = vmatpush1.msra.mxu0 0.0
  %1382 = vmatprep.subr.mxu0 0.0
  %1383 = vmatpush1.msra.mxu0 0.0
  %1384 = vmatprep.subr.mxu0 0.0
  %1385 = vmatpush1.msra.mxu0 0.0
  %1386 = vmatprep.subr.mxu0 0.0
  %1387 = vmatpush1.msra.mxu0 0.0
  %1388 = vmatprep.subr.mxu0 0.0
  %1389 = vmatpush1.msra.mxu0 0.0
  %1390 = vmatprep.subr.mxu0 0.0
  %1391 = vmatpush1.msra.mxu0 0.0
  %1392 = vmatprep.subr.mxu0 %v1360
  %1393 = vmatpush1.msra.mxu0 %v1358
  %1394 = vmatprep.subr.mxu0 0.0
  %1395 = vmatpush2.msra.mxu0 0.0
  %1396 = vmatprep.subr.mxu0 0.0
  %1397 = vmatpush2.msra.mxu0 0.0
  %1398 = vmatprep.subr.mxu0 0.0
  %1399 = vmatpush2.msra.mxu0 0.0
  %1400 = vmatprep.subr.mxu0 0.0
  %1401 = vmatpush2.msra.mxu0 0.0
  %1402 = vmatprep.subr.mxu0 0.0
  %1403 = vmatpush2.msra.mxu0 0.0
  %1404 = vmatprep.subr.mxu0 0.0
  %1405 = vmatpush2.msra.mxu0 0.0
  %1406 = vmatprep.subr.mxu0 0.0
  %1407 = vmatpush2.msra.mxu0 0.0
  %1408 = vmatprep.subr.mxu0 0.0
  %1409 = vmatpush2.msra.mxu0 0.0
  %1410 = vmatprep.subr.mxu0 0.0
  %1411 = vmatpush2.msra.mxu0 0.0
  %1412 = vmatprep.subr.mxu0 0.0
  %1413 = vmatpush2.msra.mxu0 0.0
  %1414 = vmatprep.subr.mxu0 0.0
  %1415 = vmatpush2.msra.mxu0 0.0
  %1416 = vmatprep.subr.mxu0 0.0
  %1417 = vmatpush2.msra.mxu0 0.0
  %1418 = vmatprep.subr.mxu0 0.0
  %1419 = vmatpush2.msra.mxu0 0.0
  %1420 = vmatprep.subr.mxu0 0.0
  %1421 = vmatpush2.msra.mxu0 0.0
  %1422 = vmatprep.subr.mxu0 0.0
  %1423 = vmatpush2.msra.mxu0 0.0
  %1424 = vmatprep.subr.mxu0 0.0
  %1425 = vmatpush2.msra.mxu0 0.0
  %1426 = vmatprep.mubr.f32.mxu0 0.0
  %1427 = vmatmul.mubr.f32.gmra.mxu0 %v28
  %v1428 = vpop.f32.mrf.mxu0
  %v1429 = vadd.f32 %v23, %v1428
  %v1430 = vpop.f32.mrf.mxu0
  %v1431 = vadd.f32 %v23, %v1430
  %1432 = vdwg.mxu0
  %v1434 = vsel %vm111, %v1355, 0
  %1436 = vmatprep.subr.mxu0 0.0
  %1437 = vmatpush1.xpose.msra.mxu0 0.0
  %1438 = vmatprep.subr.mxu0 0.0
  %1439 = vmatpush1.xpose.msra.mxu0 0.0
  %1440 = vmatprep.subr.mxu0 0.0
  %1441 = vmatpush1.xpose.msra.mxu0 0.0
  %1442 = vmatprep.subr.mxu0 0.0
  %1443 = vmatpush1.xpose.msra.mxu0 0.0
  %1444 = vmatprep.subr.mxu0 0.0
  %1445 = vmatpush1.xpose.msra.mxu0 0.0
  %1446 = vmatprep.subr.mxu0 0.0
  %1447 = vmatpush1.xpose.msra.mxu0 0.0
  %1448 = vmatprep.subr.mxu0 0.0
  %1449 = vmatpush1.xpose.msra.mxu0 0.0
  %1450 = vmatprep.subr.mxu0 0.0
  %1451 = vmatpush1.xpose.msra.mxu0 0.0
  %1452 = vmatprep.subr.mxu0 0.0
  %1453 = vmatpush1.xpose.msra.mxu0 0.0
  %1454 = vmatprep.subr.mxu0 0.0
  %1455 = vmatpush1.xpose.msra.mxu0 0.0
  %1456 = vmatprep.subr.mxu0 0.0
  %1457 = vmatpush1.xpose.msra.mxu0 0.0
  %1458 = vmatprep.subr.mxu0 0.0
  %1459 = vmatpush1.xpose.msra.mxu0 0.0
  %1460 = vmatprep.subr.mxu0 0.0
  %1461 = vmatpush1.xpose.msra.mxu0 0.0
  %1462 = vmatprep.subr.mxu0 0.0
  %1463 = vmatpush1.xpose.msra.mxu0 0.0
  %1464 = vmatprep.subr.mxu0 0.0
  %1465 = vmatpush1.xpose.msra.mxu0 0.0
  %1466 = vmatprep.subr.mxu0 0.0
  %1467 = vmatpush1.xpose.msra.mxu0 %v1434
  %1468 = vmatprep.subr.mxu0 0.0
  %1469 = vmatpush2.xpose.msra.mxu0 0.0
  %1470 = vmatprep.subr.mxu0 0.0
  %1471 = vmatpush2.xpose.msra.mxu0 0.0
  %1472 = vmatprep.subr.mxu0 0.0
  %1473 = vmatpush2.xpose.msra.mxu0 0.0
  %1474 = vmatprep.subr.mxu0 0.0
  %1475 = vmatpush2.xpose.msra.mxu0 0.0
  %1476 = vmatprep.subr.mxu0 0.0
  %1477 = vmatpush2.xpose.msra.mxu0 0.0
  %1478 = vmatprep.subr.mxu0 0.0
  %1479 = vmatpush2.xpose.msra.mxu0 0.0
  %1480 = vmatprep.subr.mxu0 0.0
  %1481 = vmatpush2.xpose.msra.mxu0 0.0
  %1482 = vmatprep.subr.mxu0 0.0
  %1483 = vmatpush2.xpose.msra.mxu0 0.0
  %1484 = vmatprep.subr.mxu0 0.0
  %1485 = vmatpush2.xpose.msra.mxu0 0.0
  %1486 = vmatprep.subr.mxu0 0.0
  %1487 = vmatpush2.xpose.msra.mxu0 0.0
  %1488 = vmatprep.subr.mxu0 0.0
  %1489 = vmatpush2.xpose.msra.mxu0 0.0
  %1490 = vmatprep.subr.mxu0 0.0
  %1491 = vmatpush2.xpose.msra.mxu0 0.0
  %1492 = vmatprep.subr.mxu0 0.0
  %1493 = vmatpush2.xpose.msra.mxu0 0.0
  %1494 = vmatprep.subr.mxu0 0.0
  %1495 = vmatpush2.xpose.msra.mxu0 0.0
  %1496 = vmatprep.subr.mxu0 0.0
  %1497 = vmatpush2.xpose.msra.mxu0 0.0
  %1498 = vmatprep.subr.mxu0 0.0
  %1499 = vmatpush2.xpose.msra.mxu0 0.0
  %1500 = vmatprep.mubr.f32.mxu0 0.0
  %1501 = vmatmul.mubr.f32.gmra.mxu0 %v112
  %v1502 = vpop.f32.mrf.mxu0
  %v1503 = vadd.f32 %v109, %v1502
  %v1504 = vpop.f32.mrf.mxu0
  %1505 = vdwg.mxu0
  %1506 = vxpose.xlu0.b32.start [1/16] %v1503, 128
  %1507 = vxpose.xlu0.b32.cont [2/16] 0.0, 128
  %1508 = vxpose.xlu0.b32.cont [3/16] 0.0, 128
  %1509 = vxpose.xlu0.b32.cont [4/16] 0.0, 128
  %1510 = vxpose.xlu0.b32.cont [5/16] 0.0, 128
  %1511 = vxpose.xlu0.b32.cont [6/16] 0.0, 128
  %1512 = vxpose.xlu0.b32.cont [7/16] 0.0, 128
  %1513 = vxpose.xlu0.b32.cont [8/16] 0.0, 128
  %1514 = vxpose.xlu0.b32.cont [9/16] 0.0, 128
  %1515 = vxpose.xlu0.b32.cont [10/16] 0.0, 128
  %1516 = vxpose.xlu0.b32.cont [11/16] 0.0, 128
  %1517 = vxpose.xlu0.b32.cont [12/16] 0.0, 128
  %1518 = vxpose.xlu0.b32.cont [13/16] 0.0, 128
  %1519 = vxpose.xlu0.b32.cont [14/16] 0.0, 128
  %1520 = vxpose.xlu0.b32.cont [15/16] 0.0, 128
  %1521 = vxpose.xlu0.b32.end [16/16] 0.0, 128
  %v1522 = vpop.trf.xlu0
  %v1523 = vpop.trf.xlu0
  %v1524 = vpop.trf.xlu0
  %v1525 = vpop.trf.xlu0
  %v1526 = vpop.trf.xlu0
  %v1527 = vpop.trf.xlu0
  %v1528 = vpop.trf.xlu0
  %v1529 = vpop.trf.xlu0
  %v1530 = vpop.trf.xlu0
  %v1531 = vpop.trf.xlu0
  %v1532 = vpop.trf.xlu0
  %v1533 = vpop.trf.xlu0
  %v1534 = vpop.trf.xlu0
  %v1535 = vpop.trf.xlu0
  %v1536 = vpop.trf.xlu0
  %v1537 = vpop.trf.xlu0
  %v1539 = vsel %vm27, %v1522, 0
  %v1542 = vsel %vm30, %v1429, 0
  %v1545 = vsel %vm30, %v1431, 0
  %1547 = vmatprep.subr.mxu0 0.0
  %1548 = vmatpush1.msra.mxu0 0.0
  %1549 = vmatprep.subr.mxu0 0.0
  %1550 = vmatpush1.msra.mxu0 0.0
  %1551 = vmatprep.subr.mxu0 0.0
  %1552 = vmatpush1.msra.mxu0 0.0
  %1553 = vmatprep.subr.mxu0 0.0
  %1554 = vmatpush1.msra.mxu0 0.0
  %1555 = vmatprep.subr.mxu0 0.0
  %1556 = vmatpush1.msra.mxu0 0.0
  %1557 = vmatprep.subr.mxu0 0.0
  %1558 = vmatpush1.msra.mxu0 0.0
  %1559 = vmatprep.subr.mxu0 0.0
  %1560 = vmatpush1.msra.mxu0 0.0
  %1561 = vmatprep.subr.mxu0 0.0
  %1562 = vmatpush1.msra.mxu0 0.0
  %1563 = vmatprep.subr.mxu0 0.0
  %1564 = vmatpush1.msra.mxu0 0.0
  %1565 = vmatprep.subr.mxu0 0.0
  %1566 = vmatpush1.msra.mxu0 0.0
  %1567 = vmatprep.subr.mxu0 0.0
  %1568 = vmatpush1.msra.mxu0 0.0
  %1569 = vmatprep.subr.mxu0 0.0
  %1570 = vmatpush1.msra.mxu0 0.0
  %1571 = vmatprep.subr.mxu0 0.0
  %1572 = vmatpush1.msra.mxu0 0.0
  %1573 = vmatprep.subr.mxu0 0.0
  %1574 = vmatpush1.msra.mxu0 0.0
  %1575 = vmatprep.subr.mxu0 0.0
  %1576 = vmatpush1.msra.mxu0 0.0
  %1577 = vmatprep.subr.mxu0 %v1545
  %1578 = vmatpush1.msra.mxu0 %v1542
  %1579 = vmatprep.subr.mxu0 0.0
  %1580 = vmatpush2.msra.mxu0 0.0
  %1581 = vmatprep.subr.mxu0 0.0
  %1582 = vmatpush2.msra.mxu0 0.0
  %1583 = vmatprep.subr.mxu0 0.0
  %1584 = vmatpush2.msra.mxu0 0.0
  %1585 = vmatprep.subr.mxu0 0.0
  %1586 = vmatpush2.msra.mxu0 0.0
  %1587 = vmatprep.subr.mxu0 0.0
  %1588 = vmatpush2.msra.mxu0 0.0
  %1589 = vmatprep.subr.mxu0 0.0
  %1590 = vmatpush2.msra.mxu0 0.0
  %1591 = vmatprep.subr.mxu0 0.0
  %1592 = vmatpush2.msra.mxu0 0.0
  %1593 = vmatprep.subr.mxu0 0.0
  %1594 = vmatpush2.msra.mxu0 0.0
  %1595 = vmatprep.subr.mxu0 0.0
  %1596 = vmatpush2.msra.mxu0 0.0
  %1597 = vmatprep.subr.mxu0 0.0
  %1598 = vmatpush2.msra.mxu0 0.0
  %1599 = vmatprep.subr.mxu0 0.0
  %1600 = vmatpush2.msra.mxu0 0.0
  %1601 = vmatprep.subr.mxu0 0.0
  %1602 = vmatpush2.msra.mxu0 0.0
  %1603 = vmatprep.subr.mxu0 0.0
  %1604 = vmatpush2.msra.mxu0 0.0
  %1605 = vmatprep.subr.mxu0 0.0
  %1606 = vmatpush2.msra.mxu0 0.0
  %1607 = vmatprep.subr.mxu0 0.0
  %1608 = vmatpush2.msra.mxu0 0.0
  %1609 = vmatprep.subr.mxu0 0.0
  %1610 = vmatpush2.msra.mxu0 0.0
  %1611 = vmatprep.mubr.f32.mxu0 0.0
  %1612 = vmatmul.mubr.f32.gmra.mxu0 %v1539
  %v1613 = vpop.f32.mrf.mxu0
  %v1614 = vadd.f32 0.0, %v1613
  %v1615 = vpop.f32.mrf.mxu0
  %v1616 = vadd.f32 0.0, %v1615
  %1617 = vdwg.mxu0
  %v1618 = vrot.slane %v1614, 4
  %v1619 = vmax.f32 %v1614, %v1618
  %v1620 = vrot.slane %v1619, 2
  %v1621 = vmax.f32 %v1619, %v1620
  %v1622 = vrot.slane %v1621, 1
  %v1623 = vmax.f32 %v1621, %v1622
  %v1624 = vrot.slane %v1616, 4
  %v1625 = vmax.f32 %v1616, %v1624
  %v1626 = vrot.slane %v1625, 2
  %v1627 = vmax.f32 %v1625, %v1626
  %v1628 = vrot.slane %v1627, 1
  %v1629 = vmax.f32 %v1627, %v1628
  %v1630 = vsub.f32 %v1614, %v1623
  %v1631 = vsub.f32 %v1616, %v1629
  %v1632 = vmul.f32 %v1630, 1.442695
  %v1633 = vpow.pop %v1632
  %v1634 = vmul.f32 %v1631, 1.442695
  %v1635 = vpow.pop %v1634
  %v1636 = vrot.slane %v1633, 4
  %v1637 = vadd.f32 %v1633, %v1636
  %v1638 = vrot.slane %v1637, 2
  %v1639 = vadd.f32 %v1637, %v1638
  %v1640 = vrot.slane %v1639, 1
  %v1641 = vadd.f32 %v1639, %v1640
  %v1642 = vrot.slane %v1635, 4
  %v1643 = vadd.f32 %v1635, %v1642
  %v1644 = vrot.slane %v1643, 2
  %v1645 = vadd.f32 %v1643, %v1644
  %v1646 = vrot.slane %v1645, 1
  %v1647 = vadd.f32 %v1645, %v1646
  %v1648 = vrcp.pop %v1641
  %v1649 = vmul.f32 1.0, %v1648
  %v1650 = vrcp.pop %v1647
  %v1651 = vmul.f32 1.0, %v1650
  %v1653 = vrot.slane %v1503, 4
  %v1654 = vsel %vm335, %v1653, 0
  %1656 = vmatprep.subr.mxu0 0.0
  %1657 = vmatpush1.msra.mxu0 0.0
  %1658 = vmatprep.subr.mxu0 0.0
  %1659 = vmatpush1.msra.mxu0 0.0
  %1660 = vmatprep.subr.mxu0 0.0
  %1661 = vmatpush1.msra.mxu0 0.0
  %1662 = vmatprep.subr.mxu0 0.0
  %1663 = vmatpush1.msra.mxu0 0.0
  %1664 = vmatprep.subr.mxu0 0.0
  %1665 = vmatpush1.msra.mxu0 0.0
  %1666 = vmatprep.subr.mxu0 0.0
  %1667 = vmatpush1.msra.mxu0 0.0
  %1668 = vmatprep.subr.mxu0 0.0
  %1669 = vmatpush1.msra.mxu0 0.0
  %1670 = vmatprep.subr.mxu0 0.0
  %1671 = vmatpush1.msra.mxu0 0.0
  %1672 = vmatprep.subr.mxu0 0.0
  %1673 = vmatpush1.msra.mxu0 0.0
  %1674 = vmatprep.subr.mxu0 0.0
  %1675 = vmatpush1.msra.mxu0 0.0
  %1676 = vmatprep.subr.mxu0 0.0
  %1677 = vmatpush1.msra.mxu0 0.0
  %1678 = vmatprep.subr.mxu0 0.0
  %1679 = vmatpush1.msra.mxu0 0.0
  %1680 = vmatprep.subr.mxu0 0.0
  %1681 = vmatpush1.msra.mxu0 0.0
  %1682 = vmatprep.subr.mxu0 0.0
  %1683 = vmatpush1.msra.mxu0 0.0
  %1684 = vmatprep.subr.mxu0 0.0
  %1685 = vmatpush1.msra.mxu0 0.0
  %1686 = vmatprep.subr.mxu0 %v1635
  %1687 = vmatpush1.msra.mxu0 %v1633
  %1688 = vmatprep.subr.mxu0 0.0
  %1689 = vmatpush2.msra.mxu0 0.0
  %1690 = vmatprep.subr.mxu0 0.0
  %1691 = vmatpush2.msra.mxu0 0.0
  %1692 = vmatprep.subr.mxu0 0.0
  %1693 = vmatpush2.msra.mxu0 0.0
  %1694 = vmatprep.subr.mxu0 0.0
  %1695 = vmatpush2.msra.mxu0 0.0
  %1696 = vmatprep.subr.mxu0 0.0
  %1697 = vmatpush2.msra.mxu0 0.0
  %1698 = vmatprep.subr.mxu0 0.0
  %1699 = vmatpush2.msra.mxu0 0.0
  %1700 = vmatprep.subr.mxu0 0.0
  %1701 = vmatpush2.msra.mxu0 0.0
  %1702 = vmatprep.subr.mxu0 0.0
  %1703 = vmatpush2.msra.mxu0 0.0
  %1704 = vmatprep.subr.mxu0 0.0
  %1705 = vmatpush2.msra.mxu0 0.0
  %1706 = vmatprep.subr.mxu0 0.0
  %1707 = vmatpush2.msra.mxu0 0.0
  %1708 = vmatprep.subr.mxu0 0.0
  %1709 = vmatpush2.msra.mxu0 0.0
  %1710 = vmatprep.subr.mxu0 0.0
  %1711 = vmatpush2.msra.mxu0 0.0
  %1712 = vmatprep.subr.mxu0 0.0
  %1713 = vmatpush2.msra.mxu0 0.0
  %1714 = vmatprep.subr.mxu0 0.0
  %1715 = vmatpush2.msra.mxu0 0.0
  %1716 = vmatprep.subr.mxu0 0.0
  %1717 = vmatpush2.msra.mxu0 0.0
  %1718 = vmatprep.subr.mxu0 0.0
  %1719 = vmatpush2.msra.mxu0 0.0
  %1720 = vmatprep.mubr.f32.mxu0 0.0
  %1721 = vmatmul.mubr.f32.gmra.mxu0 %v1654
  %v1722 = vpop.f32.mrf.mxu0
  %v1723 = vadd.f32 0.0, %v1722
  %v1724 = vpop.f32.mrf.mxu0
  %v1725 = vadd.f32 0.0, %v1724
  %1726 = vdwg.mxu0
  %v1727 = vmul.f32 %v1723, %v1649
  %v1728 = vmul.f32 %v1725, %v1651
  %v1730 = vsel %vm30, %v1727, 0
  %v1733 = vsel %vm30, %v1728, 0
  %1735 = vmatprep.subr.mxu0 0.0
  %1736 = vmatpush1.msra.mxu0 0.0
  %1737 = vmatprep.subr.mxu0 0.0
  %1738 = vmatpush1.msra.mxu0 0.0
  %1739 = vmatprep.subr.mxu0 0.0
  %1740 = vmatpush1.msra.mxu0 0.0
  %1741 = vmatprep.subr.mxu0 0.0
  %1742 = vmatpush1.msra.mxu0 0.0
  %1743 = vmatprep.subr.mxu0 0.0
  %1744 = vmatpush1.msra.mxu0 0.0
  %1745 = vmatprep.subr.mxu0 0.0
  %1746 = vmatpush1.msra.mxu0 0.0
  %1747 = vmatprep.subr.mxu0 0.0
  %1748 = vmatpush1.msra.mxu0 0.0
  %1749 = vmatprep.subr.mxu0 0.0
  %1750 = vmatpush1.msra.mxu0 0.0
  %1751 = vmatprep.subr.mxu0 0.0
  %1752 = vmatpush1.msra.mxu0 0.0
  %1753 = vmatprep.subr.mxu0 0.0
  %1754 = vmatpush1.msra.mxu0 0.0
  %1755 = vmatprep.subr.mxu0 0.0
  %1756 = vmatpush1.msra.mxu0 0.0
  %1757 = vmatprep.subr.mxu0 0.0
  %1758 = vmatpush1.msra.mxu0 0.0
  %1759 = vmatprep.subr.mxu0 0.0
  %1760 = vmatpush1.msra.mxu0 0.0
  %1761 = vmatprep.subr.mxu0 0.0
  %1762 = vmatpush1.msra.mxu0 0.0
  %1763 = vmatprep.subr.mxu0 0.0
  %1764 = vmatpush1.msra.mxu0 0.0
  %1765 = vmatprep.subr.mxu0 %v1733
  %1766 = vmatpush1.msra.mxu0 %v1730
  %1767 = vmatprep.subr.mxu0 0.0
  %1768 = vmatpush2.msra.mxu0 0.0
  %1769 = vmatprep.subr.mxu0 0.0
  %1770 = vmatpush2.msra.mxu0 0.0
  %1771 = vmatprep.subr.mxu0 0.0
  %1772 = vmatpush2.msra.mxu0 0.0
  %1773 = vmatprep.subr.mxu0 0.0
  %1774 = vmatpush2.msra.mxu0 0.0
  %1775 = vmatprep.subr.mxu0 0.0
  %1776 = vmatpush2.msra.mxu0 0.0
  %1777 = vmatprep.subr.mxu0 0.0
  %1778 = vmatpush2.msra.mxu0 0.0
  %1779 = vmatprep.subr.mxu0 0.0
  %1780 = vmatpush2.msra.mxu0 0.0
  %1781 = vmatprep.subr.mxu0 0.0
  %1782 = vmatpush2.msra.mxu0 0.0
  %1783 = vmatprep.subr.mxu0 0.0
  %1784 = vmatpush2.msra.mxu0 0.0
  %1785 = vmatprep.subr.mxu0 0.0
  %1786 = vmatpush2.msra.mxu0 0.0
  %1787 = vmatprep.subr.mxu0 0.0
  %1788 = vmatpush2.msra.mxu0 0.0
  %1789 = vmatprep.subr.mxu0 0.0
  %1790 = vmatpush2.msra.mxu0 0.0
  %1791 = vmatprep.subr.mxu0 0.0
  %1792 = vmatpush2.msra.mxu0 0.0
  %1793 = vmatprep.subr.mxu0 0.0
  %1794 = vmatpush2.msra.mxu0 0.0
  %1795 = vmatprep.subr.mxu0 0.0
  %1796 = vmatpush2.msra.mxu0 0.0
  %1797 = vmatprep.subr.mxu0 0.0
  %1798 = vmatpush2.msra.mxu0 0.0
  %1799 = vmatprep.mubr.f32.mxu0 0.0
  %1800 = vmatmul.mubr.f32.gmra.mxu0 %v421
  %v1801 = vpop.f32.mrf.mxu0
  %v1802 = vadd.f32 %v414, %v1801
  %v1803 = vpop.f32.mrf.mxu0
  %v1804 = vadd.f32 %v414, %v1803
  %1805 = vmatprep.mubr.f32.mxu0 0.0
  %1806 = vmatmul.mubr.f32.gmra.mxu0 %v423
  %v1807 = vpop.f32.mrf.mxu0
  %v1808 = vadd.f32 %v419, %v1807
  %v1809 = vpop.f32.mrf.mxu0
  %v1810 = vadd.f32 %v419, %v1809
  %1811 = vdwg.mxu0
  %v1814 = vrot.slane %v1802, 4
  %v1815 = vrot.slane %v1804, 4
  %1818 = vxpose.xlu0.b32.start [1/16] %v1814, 128
  %1819 = vxpose.xlu0.b32.cont [2/16] 0.0, 128
  %1820 = vxpose.xlu0.b32.cont [3/16] 0.0, 128
  %1821 = vxpose.xlu0.b32.cont [4/16] 0.0, 128
  %1822 = vxpose.xlu0.b32.cont [5/16] 0.0, 128
  %1823 = vxpose.xlu0.b32.cont [6/16] 0.0, 128
  %1824 = vxpose.xlu0.b32.cont [7/16] 0.0, 128
  %1825 = vxpose.xlu0.b32.cont [8/16] 0.0, 128
  %1826 = vxpose.xlu0.b32.cont [9/16] 0.0, 128
  %1827 = vxpose.xlu0.b32.cont [10/16] 0.0, 128
  %1828 = vxpose.xlu0.b32.cont [11/16] 0.0, 128
  %1829 = vxpose.xlu0.b32.cont [12/16] 0.0, 128
  %1830 = vxpose.xlu0.b32.cont [13/16] 0.0, 128
  %1831 = vxpose.xlu0.b32.cont [14/16] 0.0, 128
  %1832 = vxpose.xlu0.b32.cont [15/16] 0.0, 128
  %1833 = vxpose.xlu0.b32.end [16/16] 0.0, 128
  %v1834 = vpop.trf.xlu0
  %v1835 = vpop.trf.xlu0
  %v1836 = vpop.trf.xlu0
  %v1837 = vpop.trf.xlu0
  %v1838 = vpop.trf.xlu0
  %v1839 = vpop.trf.xlu0
  %v1840 = vpop.trf.xlu0
  %v1841 = vpop.trf.xlu0
  %v1842 = vpop.trf.xlu0
  %v1843 = vpop.trf.xlu0
  %v1844 = vpop.trf.xlu0
  %v1845 = vpop.trf.xlu0
  %v1846 = vpop.trf.xlu0
  %v1847 = vpop.trf.xlu0
  %v1848 = vpop.trf.xlu0
  %v1849 = vpop.trf.xlu0
  %1850 = vxpose.xlu0.b32.start [1/16] %v1815, 128
  %1851 = vxpose.xlu0.b32.cont [2/16] 0.0, 128
  %1852 = vxpose.xlu0.b32.cont [3/16] 0.0, 128
  %1853 = vxpose.xlu0.b32.cont [4/16] 0.0, 128
  %1854 = vxpose.xlu0.b32.cont [5/16] 0.0, 128
  %1855 = vxpose.xlu0.b32.cont [6/16] 0.0, 128
  %1856 = vxpose.xlu0.b32.cont [7/16] 0.0, 128
  %1857 = vxpose.xlu0.b32.cont [8/16] 0.0, 128
  %1858 = vxpose.xlu0.b32.cont [9/16] 0.0, 128
  %1859 = vxpose.xlu0.b32.cont [10/16] 0.0, 128
  %1860 = vxpose.xlu0.b32.cont [11/16] 0.0, 128
  %1861 = vxpose.xlu0.b32.cont [12/16] 0.0, 128
  %1862 = vxpose.xlu0.b32.cont [13/16] 0.0, 128
  %1863 = vxpose.xlu0.b32.cont [14/16] 0.0, 128
  %1864 = vxpose.xlu0.b32.cont [15/16] 0.0, 128
  %1865 = vxpose.xlu0.b32.end [16/16] 0.0, 128
  %v1866 = vpop.trf.xlu0
  %v1867 = vpop.trf.xlu0
  %v1868 = vpop.trf.xlu0
  %v1869 = vpop.trf.xlu0
  %v1870 = vpop.trf.xlu0
  %v1871 = vpop.trf.xlu0
  %v1872 = vpop.trf.xlu0
  %v1873 = vpop.trf.xlu0
  %v1874 = vpop.trf.xlu0
  %v1875 = vpop.trf.xlu0
  %v1876 = vpop.trf.xlu0
  %v1877 = vpop.trf.xlu0
  %v1878 = vpop.trf.xlu0
  %v1879 = vpop.trf.xlu0
  %v1880 = vpop.trf.xlu0
  %v1881 = vpop.trf.xlu0
  %v1883 = vsel %vm27, %v1834, 0
  %v1886 = vsel %vm27, %v1835, 0
  %v1889 = vsel %vm27, %v1836, 0
  %v1892 = vsel %vm27, %v1837, 0
  %v1895 = vsel %vm27, %v1838, 0
  %v1898 = vsel %vm27, %v1839, 0
  %v1901 = vsel %vm27, %v1840, 0
  %v1904 = vsel %vm27, %v1841, 0
  %v1907 = vsel %vm27, %v1842, 0
  %v1910 = vsel %vm27, %v1843, 0
  %v1913 = vsel %vm27, %v1844, 0
  %v1916 = vsel %vm27, %v1845, 0
  %v1919 = vsel %vm27, %v1846, 0
  %v1922 = vsel %vm27, %v1847, 0
  %v1925 = vsel %vm27, %v1848, 0
  %v1928 = vsel %vm27, %v1849, 0
  %v1931 = vsel %vm27, %v1866, 0
  %v1934 = vsel %vm27, %v1867, 0
  %v1937 = vsel %vm27, %v1868, 0
  %v1940 = vsel %vm27, %v1869, 0
  %v1943 = vsel %vm27, %v1870, 0
  %v1946 = vsel %vm27, %v1871, 0
  %v1949 = vsel %vm27, %v1872, 0
  %v1952 = vsel %vm27, %v1873, 0
  %v1955 = vsel %vm27, %v1874, 0
  %v1958 = vsel %vm27, %v1875, 0
  %v1961 = vsel %vm27, %v1876, 0
  %v1964 = vsel %vm27, %v1877, 0
  %v1967 = vsel %vm27, %v1878, 0
  %v1970 = vsel %vm27, %v1879, 0
  %v1973 = vsel %vm27, %v1880, 0
  %v1976 = vsel %vm27, %v1881, 0
  %v1978 = vsel %vm30, %v1802, 0
  %v1980 = vsel %vm30, %v1804, 0
  %1982 = vmatprep.subr.mxu0 0.0
  %1983 = vmatpush1.msra.mxu0 0.0
  %1984 = vmatprep.subr.mxu0 0.0
  %1985 = vmatpush1.msra.mxu0 0.0
  %1986 = vmatprep.subr.mxu0 0.0
  %1987 = vmatpush1.msra.mxu0 0.0
  %1988 = vmatprep.subr.mxu0 0.0
  %1989 = vmatpush1.msra.mxu0 0.0
  %1990 = vmatprep.subr.mxu0 0.0
  %1991 = vmatpush1.msra.mxu0 0.0
  %1992 = vmatprep.subr.mxu0 0.0
  %1993 = vmatpush1.msra.mxu0 0.0
  %1994 = vmatprep.subr.mxu0 0.0
  %1995 = vmatpush1.msra.mxu0 0.0
  %1996 = vmatprep.subr.mxu0 0.0
  %1997 = vmatpush1.msra.mxu0 0.0
  %1998 = vmatprep.subr.mxu0 0.0
  %1999 = vmatpush1.msra.mxu0 0.0
  %2000 = vmatprep.subr.mxu0 0.0
  %2001 = vmatpush1.msra.mxu0 0.0
  %2002 = vmatprep.subr.mxu0 0.0
  %2003 = vmatpush1.msra.mxu0 0.0
  %2004 = vmatprep.subr.mxu0 0.0
  %2005 = vmatpush1.msra.mxu0 0.0
  %2006 = vmatprep.subr.mxu0 0.0
  %2007 = vmatpush1.msra.mxu0 0.0
  %2008 = vmatprep.subr.mxu0 0.0
  %2009 = vmatpush1.msra.mxu0 0.0
  %2010 = vmatprep.subr.mxu0 0.0
  %2011 = vmatpush1.msra.mxu0 0.0
  %2012 = vmatprep.subr.mxu0 %v1980
  %2013 = vmatpush1.msra.mxu0 %v1978
  %2014 = vmatprep.subr.mxu0 0.0
  %2015 = vmatpush2.msra.mxu0 0.0
  %2016 = vmatprep.subr.mxu0 0.0
  %2017 = vmatpush2.msra.mxu0 0.0
  %2018 = vmatprep.subr.mxu0 0.0
  %2019 = vmatpush2.msra.mxu0 0.0
  %2020 = vmatprep.subr.mxu0 0.0
  %2021 = vmatpush2.msra.mxu0 0.0
  %2022 = vmatprep.subr.mxu0 0.0
  %2023 = vmatpush2.msra.mxu0 0.0
  %2024 = vmatprep.subr.mxu0 0.0
  %2025 = vmatpush2.msra.mxu0 0.0
  %2026 = vmatprep.subr.mxu0 0.0
  %2027 = vmatpush2.msra.mxu0 0.0
  %2028 = vmatprep.subr.mxu0 0.0
  %2029 = vmatpush2.msra.mxu0 0.0
  %2030 = vmatprep.subr.mxu0 0.0
  %2031 = vmatpush2.msra.mxu0 0.0
  %2032 = vmatprep.subr.mxu0 0.0
  %2033 = vmatpush2.msra.mxu0 0.0
  %2034 = vmatprep.subr.mxu0 0.0
  %2035 = vmatpush2.msra.mxu0 0.0
  %2036 = vmatprep.subr.mxu0 0.0
  %2037 = vmatpush2.msra.mxu0 0.0
  %2038 = vmatprep.subr.mxu0 0.0
  %2039 = vmatpush2.msra.mxu0 0.0
  %2040 = vmatprep.subr.mxu0 0.0
  %2041 = vmatpush2.msra.mxu0 0.0
  %2042 = vmatprep.subr.mxu0 0.0
  %2043 = vmatpush2.msra.mxu0 0.0
  %2044 = vmatprep.subr.mxu0 0.0
  %2045 = vmatpush2.msra.mxu0 0.0
  %2046 = vmatprep.mubr.f32.mxu0 0.0
  %2047 = vmatmul.mubr.f32.gmra.mxu0 %v1883
  %v2048 = vpop.f32.mrf.mxu0
  %v2049 = vadd.f32 0.0, %v2048
  %v2050 = vpop.f32.mrf.mxu0
  %v2051 = vadd.f32 0.0, %v2050
  %2052 = vmatprep.mubr.f32.mxu0 0.0
  %2053 = vmatmul.mubr.f32.gmra.mxu0 %v1886
  %v2054 = vpop.f32.mrf.mxu0
  %v2055 = vadd.f32 0.0, %v2054
  %v2056 = vpop.f32.mrf.mxu0
  %v2057 = vadd.f32 0.0, %v2056
  %2058 = vmatprep.mubr.f32.mxu0 0.0
  %2059 = vmatmul.mubr.f32.gmra.mxu0 %v1889
  %v2060 = vpop.f32.mrf.mxu0
  %v2061 = vadd.f32 0.0, %v2060
  %v2062 = vpop.f32.mrf.mxu0
  %v2063 = vadd.f32 0.0, %v2062
  %2064 = vmatprep.mubr.f32.mxu0 0.0
  %2065 = vmatmul.mubr.f32.gmra.mxu0 %v1892
  %v2066 = vpop.f32.mrf.mxu0
  %v2067 = vadd.f32 0.0, %v2066
  %v2068 = vpop.f32.mrf.mxu0
  %v2069 = vadd.f32 0.0, %v2068
  %2070 = vmatprep.mubr.f32.mxu0 0.0
  %2071 = vmatmul.mubr.f32.gmra.mxu0 %v1895
  %v2072 = vpop.f32.mrf.mxu0
  %v2073 = vadd.f32 0.0, %v2072
  %v2074 = vpop.f32.mrf.mxu0
  %v2075 = vadd.f32 0.0, %v2074
  %2076 = vmatprep.mubr.f32.mxu0 0.0
  %2077 = vmatmul.mubr.f32.gmra.mxu0 %v1898
  %v2078 = vpop.f32.mrf.mxu0
  %v2079 = vadd.f32 0.0, %v2078
  %v2080 = vpop.f32.mrf.mxu0
  %v2081 = vadd.f32 0.0, %v2080
  %2082 = vmatprep.mubr.f32.mxu0 0.0
  %2083 = vmatmul.mubr.f32.gmra.mxu0 %v1901
  %v2084 = vpop.f32.mrf.mxu0
  %v2085 = vadd.f32 0.0, %v2084
  %v2086 = vpop.f32.mrf.mxu0
  %v2087 = vadd.f32 0.0, %v2086
  %2088 = vmatprep.mubr.f32.mxu0 0.0
  %2089 = vmatmul.mubr.f32.gmra.mxu0 %v1904
  %v2090 = vpop.f32.mrf.mxu0
  %v2091 = vadd.f32 0.0, %v2090
  %v2092 = vpop.f32.mrf.mxu0
  %v2093 = vadd.f32 0.0, %v2092
  %2094 = vmatprep.mubr.f32.mxu0 0.0
  %2095 = vmatmul.mubr.f32.gmra.mxu0 %v1907
  %v2096 = vpop.f32.mrf.mxu0
  %v2097 = vadd.f32 0.0, %v2096
  %v2098 = vpop.f32.mrf.mxu0
  %v2099 = vadd.f32 0.0, %v2098
  %2100 = vmatprep.mubr.f32.mxu0 0.0
  %2101 = vmatmul.mubr.f32.gmra.mxu0 %v1910
  %v2102 = vpop.f32.mrf.mxu0
  %v2103 = vadd.f32 0.0, %v2102
  %v2104 = vpop.f32.mrf.mxu0
  %v2105 = vadd.f32 0.0, %v2104
  %2106 = vmatprep.mubr.f32.mxu0 0.0
  %2107 = vmatmul.mubr.f32.gmra.mxu0 %v1913
  %v2108 = vpop.f32.mrf.mxu0
  %v2109 = vadd.f32 0.0, %v2108
  %v2110 = vpop.f32.mrf.mxu0
  %v2111 = vadd.f32 0.0, %v2110
  %2112 = vmatprep.mubr.f32.mxu0 0.0
  %2113 = vmatmul.mubr.f32.gmra.mxu0 %v1916
  %v2114 = vpop.f32.mrf.mxu0
  %v2115 = vadd.f32 0.0, %v2114
  %v2116 = vpop.f32.mrf.mxu0
  %v2117 = vadd.f32 0.0, %v2116
  %2118 = vmatprep.mubr.f32.mxu0 0.0
  %2119 = vmatmul.mubr.f32.gmra.mxu0 %v1919
  %v2120 = vpop.f32.mrf.mxu0
  %v2121 = vadd.f32 0.0, %v2120
  %v2122 = vpop.f32.mrf.mxu0
  %v2123 = vadd.f32 0.0, %v2122
  %2124 = vmatprep.mubr.f32.mxu0 0.0
  %2125 = vmatmul.mubr.f32.gmra.mxu0 %v1922
  %v2126 = vpop.f32.mrf.mxu0
  %v2127 = vadd.f32 0.0, %v2126
  %v2128 = vpop.f32.mrf.mxu0
  %v2129 = vadd.f32 0.0, %v2128
  %2130 = vmatprep.mubr.f32.mxu0 0.0
  %2131 = vmatmul.mubr.f32.gmra.mxu0 %v1925
  %v2132 = vpop.f32.mrf.mxu0
  %v2133 = vadd.f32 0.0, %v2132
  %v2134 = vpop.f32.mrf.mxu0
  %v2135 = vadd.f32 0.0, %v2134
  %2136 = vmatprep.mubr.f32.mxu0 0.0
  %2137 = vmatmul.mubr.f32.gmra.mxu0 %v1928
  %v2138 = vpop.f32.mrf.mxu0
  %v2139 = vadd.f32 0.0, %v2138
  %v2140 = vpop.f32.mrf.mxu0
  %v2141 = vadd.f32 0.0, %v2140
  %2142 = vmatprep.mubr.f32.mxu0 0.0
  %2143 = vmatmul.mubr.f32.gmra.mxu0 %v1931
  %v2144 = vpop.f32.mrf.mxu0
  %v2145 = vadd.f32 0.0, %v2144
  %v2146 = vpop.f32.mrf.mxu0
  %v2147 = vadd.f32 0.0, %v2146
  %2148 = vmatprep.mubr.f32.mxu0 0.0
  %2149 = vmatmul.mubr.f32.gmra.mxu0 %v1934
  %v2150 = vpop.f32.mrf.mxu0
  %v2151 = vadd.f32 0.0, %v2150
  %v2152 = vpop.f32.mrf.mxu0
  %v2153 = vadd.f32 0.0, %v2152
  %2154 = vmatprep.mubr.f32.mxu0 0.0
  %2155 = vmatmul.mubr.f32.gmra.mxu0 %v1937
  %v2156 = vpop.f32.mrf.mxu0
  %v2157 = vadd.f32 0.0, %v2156
  %v2158 = vpop.f32.mrf.mxu0
  %v2159 = vadd.f32 0.0, %v2158
  %2160 = vmatprep.mubr.f32.mxu0 0.0
  %2161 = vmatmul.mubr.f32.gmra.mxu0 %v1940
  %v2162 = vpop.f32.mrf.mxu0
  %v2163 = vadd.f32 0.0, %v2162
  %v2164 = vpop.f32.mrf.mxu0
  %v2165 = vadd.f32 0.0, %v2164
  %2166 = vmatprep.mubr.f32.mxu0 0.0
  %2167 = vmatmul.mubr.f32.gmra.mxu0 %v1943
  %v2168 = vpop.f32.mrf.mxu0
  %v2169 = vadd.f32 0.0, %v2168
  %v2170 = vpop.f32.mrf.mxu0
  %v2171 = vadd.f32 0.0, %v2170
  %2172 = vmatprep.mubr.f32.mxu0 0.0
  %2173 = vmatmul.mubr.f32.gmra.mxu0 %v1946
  %v2174 = vpop.f32.mrf.mxu0
  %v2175 = vadd.f32 0.0, %v2174
  %v2176 = vpop.f32.mrf.mxu0
  %v2177 = vadd.f32 0.0, %v2176
  %2178 = vmatprep.mubr.f32.mxu0 0.0
  %2179 = vmatmul.mubr.f32.gmra.mxu0 %v1949
  %v2180 = vpop.f32.mrf.mxu0
  %v2181 = vadd.f32 0.0, %v2180
  %v2182 = vpop.f32.mrf.mxu0
  %v2183 = vadd.f32 0.0, %v2182
  %2184 = vmatprep.mubr.f32.mxu0 0.0
  %2185 = vmatmul.mubr.f32.gmra.mxu0 %v1952
  %v2186 = vpop.f32.mrf.mxu0
  %v2187 = vadd.f32 0.0, %v2186
  %v2188 = vpop.f32.mrf.mxu0
  %v2189 = vadd.f32 0.0, %v2188
  %2190 = vmatprep.mubr.f32.mxu0 0.0
  %2191 = vmatmul.mubr.f32.gmra.mxu0 %v1955
  %v2192 = vpop.f32.mrf.mxu0
  %v2193 = vadd.f32 0.0, %v2192
  %v2194 = vpop.f32.mrf.mxu0
  %v2195 = vadd.f32 0.0, %v2194
  %2196 = vmatprep.mubr.f32.mxu0 0.0
  %2197 = vmatmul.mubr.f32.gmra.mxu0 %v1958
  %v2198 = vpop.f32.mrf.mxu0
  %v2199 = vadd.f32 0.0, %v2198
  %v2200 = vpop.f32.mrf.mxu0
  %v2201 = vadd.f32 0.0, %v2200
  %2202 = vmatprep.mubr.f32.mxu0 0.0
  %2203 = vmatmul.mubr.f32.gmra.mxu0 %v1961
  %v2204 = vpop.f32.mrf.mxu0
  %v2205 = vadd.f32 0.0, %v2204
  %v2206 = vpop.f32.mrf.mxu0
  %v2207 = vadd.f32 0.0, %v2206
  %2208 = vmatprep.mubr.f32.mxu0 0.0
  %2209 = vmatmul.mubr.f32.gmra.mxu0 %v1964
  %v2210 = vpop.f32.mrf.mxu0
  %v2211 = vadd.f32 0.0, %v2210
  %v2212 = vpop.f32.mrf.mxu0
  %v2213 = vadd.f32 0.0, %v2212
  %2214 = vmatprep.mubr.f32.mxu0 0.0
  %2215 = vmatmul.mubr.f32.gmra.mxu0 %v1967
  %v2216 = vpop.f32.mrf.mxu0
  %v2217 = vadd.f32 0.0, %v2216
  %v2218 = vpop.f32.mrf.mxu0
  %v2219 = vadd.f32 0.0, %v2218
  %2220 = vmatprep.mubr.f32.mxu0 0.0
  %2221 = vmatmul.mubr.f32.gmra.mxu0 %v1970
  %v2222 = vpop.f32.mrf.mxu0
  %v2223 = vadd.f32 0.0, %v2222
  %v2224 = vpop.f32.mrf.mxu0
  %v2225 = vadd.f32 0.0, %v2224
  %2226 = vmatprep.mubr.f32.mxu0 0.0
  %2227 = vmatmul.mubr.f32.gmra.mxu0 %v1973
  %v2228 = vpop.f32.mrf.mxu0
  %v2229 = vadd.f32 0.0, %v2228
  %v2230 = vpop.f32.mrf.mxu0
  %v2231 = vadd.f32 0.0, %v2230
  %2232 = vmatprep.mubr.f32.mxu0 0.0
  %2233 = vmatmul.mubr.f32.gmra.mxu0 %v1976
  %v2234 = vpop.f32.mrf.mxu0
  %v2235 = vadd.f32 0.0, %v2234
  %v2236 = vpop.f32.mrf.mxu0
  %v2237 = vadd.f32 0.0, %v2236
  %2238 = vdwg.mxu0
  %v2239 = vmax.f32 %v2049, %v2061
  %v2240 = vmax.f32 %v2055, %v2067
  %v2241 = vmax.f32 %v2239, %v2073
  %v2242 = vmax.f32 %v2240, %v2079
  %v2243 = vmax.f32 %v2241, %v2085
  %v2244 = vmax.f32 %v2242, %v2091
  %v2245 = vmax.f32 %v2243, %v2097
  %v2246 = vmax.f32 %v2244, %v2103
  %v2247 = vmax.f32 %v2245, %v2109
  %v2248 = vmax.f32 %v2246, %v2115
  %v2249 = vmax.f32 %v2247, %v2121
  %v2250 = vmax.f32 %v2248, %v2127
  %v2251 = vmax.f32 %v2249, %v2133
  %v2252 = vmax.f32 %v2250, %v2139
  %v2253 = vmax.f32 %v2251, %v2145
  %v2254 = vmax.f32 %v2252, %v2151
  %v2255 = vmax.f32 %v2253, %v2157
  %v2256 = vmax.f32 %v2254, %v2163
  %v2257 = vmax.f32 %v2255, %v2169
  %v2258 = vmax.f32 %v2256, %v2175
  %v2259 = vmax.f32 %v2257, %v2181
  %v2260 = vmax.f32 %v2258, %v2187
  %v2261 = vmax.f32 %v2259, %v2193
  %v2262 = vmax.f32 %v2260, %v2199
  %v2263 = vmax.f32 %v2261, %v2205
  %v2264 = vmax.f32 %v2262, %v2211
  %v2265 = vmax.f32 %v2263, %v2217
  %v2266 = vmax.f32 %v2264, %v2223
  %v2267 = vmax.f32 %v2265, %v2229
  %v2268 = vmax.f32 %v2266, %v2235
  %v2269 = vmax.f32 %v2267, %v2268
  %v2270 = vrot.slane %v2269, 4
  %v2271 = vmax.f32 %v2269, %v2270
  %v2272 = vrot.slane %v2271, 2
  %v2273 = vmax.f32 %v2271, %v2272
  %v2274 = vrot.slane %v2273, 1
  %v2275 = vmax.f32 %v2273, %v2274
  %v2276 = vmax.f32 %v2051, %v2063
  %v2277 = vmax.f32 %v2057, %v2069
  %v2278 = vmax.f32 %v2276, %v2075
  %v2279 = vmax.f32 %v2277, %v2081
  %v2280 = vmax.f32 %v2278, %v2087
  %v2281 = vmax.f32 %v2279, %v2093
  %v2282 = vmax.f32 %v2280, %v2099
  %v2283 = vmax.f32 %v2281, %v2105
  %v2284 = vmax.f32 %v2282, %v2111
  %v2285 = vmax.f32 %v2283, %v2117
  %v2286 = vmax.f32 %v2284, %v2123
  %v2287 = vmax.f32 %v2285, %v2129
  %v2288 = vmax.f32 %v2286, %v2135
  %v2289 = vmax.f32 %v2287, %v2141
  %v2290 = vmax.f32 %v2288, %v2147
  %v2291 = vmax.f32 %v2289, %v2153
  %v2292 = vmax.f32 %v2290, %v2159
  %v2293 = vmax.f32 %v2291, %v2165
  %v2294 = vmax.f32 %v2292, %v2171
  %v2295 = vmax.f32 %v2293, %v2177
  %v2296 = vmax.f32 %v2294, %v2183
  %v2297 = vmax.f32 %v2295, %v2189
  %v2298 = vmax.f32 %v2296, %v2195
  %v2299 = vmax.f32 %v2297, %v2201
  %v2300 = vmax.f32 %v2298, %v2207
  %v2301 = vmax.f32 %v2299, %v2213
  %v2302 = vmax.f32 %v2300, %v2219
  %v2303 = vmax.f32 %v2301, %v2225
  %v2304 = vmax.f32 %v2302, %v2231
  %v2305 = vmax.f32 %v2303, %v2237
  %v2306 = vmax.f32 %v2304, %v2305
  %v2307 = vrot.slane %v2306, 4
  %v2308 = vmax.f32 %v2306, %v2307
  %v2309 = vrot.slane %v2308, 2
  %v2310 = vmax.f32 %v2308, %v2309
  %v2311 = vrot.slane %v2310, 1
  %v2312 = vmax.f32 %v2310, %v2311
  %v2313 = vsub.f32 %v2049, %v2275
  %v2314 = vsub.f32 %v2051, %v2312
  %v2315 = vsub.f32 %v2055, %v2275
  %v2316 = vsub.f32 %v2057, %v2312
  %v2317 = vsub.f32 %v2061, %v2275
  %v2318 = vsub.f32 %v2063, %v2312
  %v2319 = vsub.f32 %v2067, %v2275
  %v2320 = vsub.f32 %v2069, %v2312
  %v2321 = vsub.f32 %v2073, %v2275
  %v2322 = vsub.f32 %v2075, %v2312
  %v2323 = vsub.f32 %v2079, %v2275
  %v2324 = vsub.f32 %v2081, %v2312
  %v2325 = vsub.f32 %v2085, %v2275
  %v2326 = vsub.f32 %v2087, %v2312
  %v2327 = vsub.f32 %v2091, %v2275
  %v2328 = vsub.f32 %v2093, %v2312
  %v2329 = vsub.f32 %v2097, %v2275
  %v2330 = vsub.f32 %v2099, %v2312
  %v2331 = vsub.f32 %v2103, %v2275
  %v2332 = vsub.f32 %v2105, %v2312
  %v2333 = vsub.f32 %v2109, %v2275
  %v2334 = vsub.f32 %v2111, %v2312
  %v2335 = vsub.f32 %v2115, %v2275
  %v2336 = vsub.f32 %v2117, %v2312
  %v2337 = vsub.f32 %v2121, %v2275
  %v2338 = vsub.f32 %v2123, %v2312
  %v2339 = vsub.f32 %v2127, %v2275
  %v2340 = vsub.f32 %v2129, %v2312
  %v2341 = vsub.f32 %v2133, %v2275
  %v2342 = vsub.f32 %v2135, %v2312
  %v2343 = vsub.f32 %v2139, %v2275
  %v2344 = vsub.f32 %v2141, %v2312
  %v2345 = vsub.f32 %v2145, %v2275
  %v2346 = vsub.f32 %v2147, %v2312
  %v2347 = vsub.f32 %v2151, %v2275
  %v2348 = vsub.f32 %v2153, %v2312
  %v2349 = vsub.f32 %v2157, %v2275
  %v2350 = vsub.f32 %v2159, %v2312
  %v2351 = vsub.f32 %v2163, %v2275
  %v2352 = vsub.f32 %v2165, %v2312
  %v2353 = vsub.f32 %v2169, %v2275
  %v2354 = vsub.f32 %v2171, %v2312
  %v2355 = vsub.f32 %v2175, %v2275
  %v2356 = vsub.f32 %v2177, %v2312
  %v2357 = vsub.f32 %v2181, %v2275
  %v2358 = vsub.f32 %v2183, %v2312
  %v2359 = vsub.f32 %v2187, %v2275
  %v2360 = vsub.f32 %v2189, %v2312
  %v2361 = vsub.f32 %v2193, %v2275
  %v2362 = vsub.f32 %v2195, %v2312
  %v2363 = vsub.f32 %v2199, %v2275
  %v2364 = vsub.f32 %v2201, %v2312
  %v2365 = vsub.f32 %v2205, %v2275
  %v2366 = vsub.f32 %v2207, %v2312
  %v2367 = vsub.f32 %v2211, %v2275
  %v2368 = vsub.f32 %v2213, %v2312
  %v2369 = vsub.f32 %v2217, %v2275
  %v2370 = vsub.f32 %v2219, %v2312
  %v2371 = vsub.f32 %v2223, %v2275
  %v2372 = vsub.f32 %v2225, %v2312
  %v2373 = vsub.f32 %v2229, %v2275
  %v2374 = vsub.f32 %v2231, %v2312
  %v2375 = vsub.f32 %v2235, %v2275
  %v2376 = vsub.f32 %v2237, %v2312
  %v2377 = vmul.f32 %v2313, 1.442695
  %v2378 = vpow.pop %v2377
  %v2379 = vmul.f32 %v2314, 1.442695
  %v2380 = vpow.pop %v2379
  %v2381 = vmul.f32 %v2315, 1.442695
  %v2382 = vpow.pop %v2381
  %v2383 = vmul.f32 %v2316, 1.442695
  %v2384 = vpow.pop %v2383
  %v2385 = vmul.f32 %v2317, 1.442695
  %v2386 = vpow.pop %v2385
  %v2387 = vmul.f32 %v2318, 1.442695
  %v2388 = vpow.pop %v2387
  %v2389 = vmul.f32 %v2319, 1.442695
  %v2390 = vpow.pop %v2389
  %v2391 = vmul.f32 %v2320, 1.442695
  %v2392 = vpow.pop %v2391
  %v2393 = vmul.f32 %v2321, 1.442695
  %v2394 = vpow.pop %v2393
  %v2395 = vmul.f32 %v2322, 1.442695
  %v2396 = vpow.pop %v2395
  %v2397 = vmul.f32 %v2323, 1.442695
  %v2398 = vpow.pop %v2397
  %v2399 = vmul.f32 %v2324, 1.442695
  %v2400 = vpow.pop %v2399
  %v2401 = vmul.f32 %v2325, 1.442695
  %v2402 = vpow.pop %v2401
  %v2403 = vmul.f32 %v2326, 1.442695
  %v2404 = vpow.pop %v2403
  %v2405 = vmul.f32 %v2327, 1.442695
  %v2406 = vpow.pop %v2405
  %v2407 = vmul.f32 %v2328, 1.442695
  %v2408 = vpow.pop %v2407
  %v2409 = vmul.f32 %v2329, 1.442695
  %v2410 = vpow.pop %v2409
  %v2411 = vmul.f32 %v2330, 1.442695
  %v2412 = vpow.pop %v2411
  %v2413 = vmul.f32 %v2331, 1.442695
  %v2414 = vpow.pop %v2413
  %v2415 = vmul.f32 %v2332, 1.442695
  %v2416 = vpow.pop %v2415
  %v2417 = vmul.f32 %v2333, 1.442695
  %v2418 = vpow.pop %v2417
  %v2419 = vmul.f32 %v2334, 1.442695
  %v2420 = vpow.pop %v2419
  %v2421 = vmul.f32 %v2335, 1.442695
  %v2422 = vpow.pop %v2421
  %v2423 = vmul.f32 %v2336, 1.442695
  %v2424 = vpow.pop %v2423
  %v2425 = vmul.f32 %v2337, 1.442695
  %v2426 = vpow.pop %v2425
  %v2427 = vmul.f32 %v2338, 1.442695
  %v2428 = vpow.pop %v2427
  %v2429 = vmul.f32 %v2339, 1.442695
  %v2430 = vpow.pop %v2429
  %v2431 = vmul.f32 %v2340, 1.442695
  %v2432 = vpow.pop %v2431
  %v2433 = vmul.f32 %v2341, 1.442695
  %v2434 = vpow.pop %v2433
  %v2435 = vmul.f32 %v2342, 1.442695
  %v2436 = vpow.pop %v2435
  %v2437 = vmul.f32 %v2343, 1.442695
  %v2438 = vpow.pop %v2437
  %v2439 = vmul.f32 %v2344, 1.442695
  %v2440 = vpow.pop %v2439
  %v2441 = vmul.f32 %v2345, 1.442695
  %v2442 = vpow.pop %v2441
  %v2443 = vmul.f32 %v2346, 1.442695
  %v2444 = vpow.pop %v2443
  %v2445 = vmul.f32 %v2347, 1.442695
  %v2446 = vpow.pop %v2445
  %v2447 = vmul.f32 %v2348, 1.442695
  %v2448 = vpow.pop %v2447
  %v2449 = vmul.f32 %v2349, 1.442695
  %v2450 = vpow.pop %v2449
  %v2451 = vmul.f32 %v2350, 1.442695
  %v2452 = vpow.pop %v2451
  %v2453 = vmul.f32 %v2351, 1.442695
  %v2454 = vpow.pop %v2453
  %v2455 = vmul.f32 %v2352, 1.442695
  %v2456 = vpow.pop %v2455
  %v2457 = vmul.f32 %v2353, 1.442695
  %v2458 = vpow.pop %v2457
  %v2459 = vmul.f32 %v2354, 1.442695
  %v2460 = vpow.pop %v2459
  %v2461 = vmul.f32 %v2355, 1.442695
  %v2462 = vpow.pop %v2461
  %v2463 = vmul.f32 %v2356, 1.442695
  %v2464 = vpow.pop %v2463
  %v2465 = vmul.f32 %v2357, 1.442695
  %v2466 = vpow.pop %v2465
  %v2467 = vmul.f32 %v2358, 1.442695
  %v2468 = vpow.pop %v2467
  %v2469 = vmul.f32 %v2359, 1.442695
  %v2470 = vpow.pop %v2469
  %v2471 = vmul.f32 %v2360, 1.442695
  %v2472 = vpow.pop %v2471
  %v2473 = vmul.f32 %v2361, 1.442695
  %v2474 = vpow.pop %v2473
  %v2475 = vmul.f32 %v2362, 1.442695
  %v2476 = vpow.pop %v2475
  %v2477 = vmul.f32 %v2363, 1.442695
  %v2478 = vpow.pop %v2477
  %v2479 = vmul.f32 %v2364, 1.442695
  %v2480 = vpow.pop %v2479
  %v2481 = vmul.f32 %v2365, 1.442695
  %v2482 = vpow.pop %v2481
  %v2483 = vmul.f32 %v2366, 1.442695
  %v2484 = vpow.pop %v2483
  %v2485 = vmul.f32 %v2367, 1.442695
  %v2486 = vpow.pop %v2485
  %v2487 = vmul.f32 %v2368, 1.442695
  %v2488 = vpow.pop %v2487
  %v2489 = vmul.f32 %v2369, 1.442695
  %v2490 = vpow.pop %v2489
  %v2491 = vmul.f32 %v2370, 1.442695
  %v2492 = vpow.pop %v2491
  %v2493 = vmul.f32 %v2371, 1.442695
  %v2494 = vpow.pop %v2493
  %v2495 = vmul.f32 %v2372, 1.442695
  %v2496 = vpow.pop %v2495
  %v2497 = vmul.f32 %v2373, 1.442695
  %v2498 = vpow.pop %v2497
  %v2499 = vmul.f32 %v2374, 1.442695
  %v2500 = vpow.pop %v2499
  %v2501 = vmul.f32 %v2375, 1.442695
  %v2502 = vpow.pop %v2501
  %v2503 = vmul.f32 %v2376, 1.442695
  %v2504 = vpow.pop %v2503
  %v2505 = vadd.f32 %v2378, %v2382
  %v2506 = vadd.f32 %v2505, %v2386
  %v2507 = vadd.f32 %v2506, %v2390
  %v2508 = vadd.f32 %v2507, %v2394
  %v2509 = vadd.f32 %v2508, %v2398
  %v2510 = vadd.f32 %v2509, %v2402
  %v2511 = vadd.f32 %v2510, %v2406
  %v2512 = vadd.f32 %v2511, %v2410
  %v2513 = vadd.f32 %v2512, %v2414
  %v2514 = vadd.f32 %v2513, %v2418
  %v2515 = vadd.f32 %v2514, %v2422
  %v2516 = vadd.f32 %v2515, %v2426
  %v2517 = vadd.f32 %v2516, %v2430
  %v2518 = vadd.f32 %v2517, %v2434
  %v2519 = vadd.f32 %v2518, %v2438
  %v2520 = vadd.f32 %v2519, %v2442
  %v2521 = vadd.f32 %v2520, %v2446
  %v2522 = vadd.f32 %v2521, %v2450
  %v2523 = vadd.f32 %v2522, %v2454
  %v2524 = vadd.f32 %v2523, %v2458
  %v2525 = vadd.f32 %v2524, %v2462
  %v2526 = vadd.f32 %v2525, %v2466
  %v2527 = vadd.f32 %v2526, %v2470
  %v2528 = vadd.f32 %v2527, %v2474
  %v2529 = vadd.f32 %v2528, %v2478
  %v2530 = vadd.f32 %v2529, %v2482
  %v2531 = vadd.f32 %v2530, %v2486
  %v2532 = vadd.f32 %v2531, %v2490
  %v2533 = vadd.f32 %v2532, %v2494
  %v2534 = vadd.f32 %v2533, %v2498
  %v2535 = vadd.f32 %v2534, %v2502
  %v2536 = vrot.slane %v2535, 4
  %v2537 = vadd.f32 %v2535, %v2536
  %v2538 = vrot.slane %v2537, 2
  %v2539 = vadd.f32 %v2537, %v2538
  %v2540 = vrot.slane %v2539, 1
  %v2541 = vadd.f32 %v2539, %v2540
  %v2542 = vadd.f32 %v2380, %v2384
  %v2543 = vadd.f32 %v2542, %v2388
  %v2544 = vadd.f32 %v2543, %v2392
  %v2545 = vadd.f32 %v2544, %v2396
  %v2546 = vadd.f32 %v2545, %v2400
  %v2547 = vadd.f32 %v2546, %v2404
  %v2548 = vadd.f32 %v2547, %v2408
  %v2549 = vadd.f32 %v2548, %v2412
  %v2550 = vadd.f32 %v2549, %v2416
  %v2551 = vadd.f32 %v2550, %v2420
  %v2552 = vadd.f32 %v2551, %v2424
  %v2553 = vadd.f32 %v2552, %v2428
  %v2554 = vadd.f32 %v2553, %v2432
  %v2555 = vadd.f32 %v2554, %v2436
  %v2556 = vadd.f32 %v2555, %v2440
  %v2557 = vadd.f32 %v2556, %v2444
  %v2558 = vadd.f32 %v2557, %v2448
  %v2559 = vadd.f32 %v2558, %v2452
  %v2560 = vadd.f32 %v2559, %v2456
  %v2561 = vadd.f32 %v2560, %v2460
  %v2562 = vadd.f32 %v2561, %v2464
  %v2563 = vadd.f32 %v2562, %v2468
  %v2564 = vadd.f32 %v2563, %v2472
  %v2565 = vadd.f32 %v2564, %v2476
  %v2566 = vadd.f32 %v2565, %v2480
  %v2567 = vadd.f32 %v2566, %v2484
  %v2568 = vadd.f32 %v2567, %v2488
  %v2569 = vadd.f32 %v2568, %v2492
  %v2570 = vadd.f32 %v2569, %v2496
  %v2571 = vadd.f32 %v2570, %v2500
  %v2572 = vadd.f32 %v2571, %v2504
  %v2573 = vrot.slane %v2572, 4
  %v2574 = vadd.f32 %v2572, %v2573
  %v2575 = vrot.slane %v2574, 2
  %v2576 = vadd.f32 %v2574, %v2575
  %v2577 = vrot.slane %v2576, 1
  %v2578 = vadd.f32 %v2576, %v2577
  %v2579 = vrcp.pop %v2541
  %v2580 = vmul.f32 1.0, %v2579
  %v2581 = vrcp.pop %v2578
  %v2582 = vmul.f32 1.0, %v2581
  %2583 = vmatprep.subr.mxu0 %v2440
  %2584 = vmatpush1.msra.mxu0 %v2438
  %2585 = vmatprep.subr.mxu0 %v2436
  %2586 = vmatpush1.msra.mxu0 %v2434
  %2587 = vmatprep.subr.mxu0 %v2432
  %2588 = vmatpush1.msra.mxu0 %v2430
  %2589 = vmatprep.subr.mxu0 %v2428
  %2590 = vmatpush1.msra.mxu0 %v2426
  %2591 = vmatprep.subr.mxu0 %v2424
  %2592 = vmatpush1.msra.mxu0 %v2422
  %2593 = vmatprep.subr.mxu0 %v2420
  %2594 = vmatpush1.msra.mxu0 %v2418
  %2595 = vmatprep.subr.mxu0 %v2416
  %2596 = vmatpush1.msra.mxu0 %v2414
  %2597 = vmatprep.subr.mxu0 %v2412
  %2598 = vmatpush1.msra.mxu0 %v2410
  %2599 = vmatprep.subr.mxu0 %v2408
  %2600 = vmatpush1.msra.mxu0 %v2406
  %2601 = vmatprep.subr.mxu0 %v2404
  %2602 = vmatpush1.msra.mxu0 %v2402
  %2603 = vmatprep.subr.mxu0 %v2400
  %2604 = vmatpush1.msra.mxu0 %v2398
  %2605 = vmatprep.subr.mxu0 %v2396
  %2606 = vmatpush1.msra.mxu0 %v2394
  %2607 = vmatprep.subr.mxu0 %v2392
  %2608 = vmatpush1.msra.mxu0 %v2390
  %2609 = vmatprep.subr.mxu0 %v2388
  %2610 = vmatpush1.msra.mxu0 %v2386
  %2611 = vmatprep.subr.mxu0 %v2384
  %2612 = vmatpush1.msra.mxu0 %v2382
  %2613 = vmatprep.subr.mxu0 %v2380
  %2614 = vmatpush1.msra.mxu0 %v2378
  %2615 = vmatprep.subr.mxu0 %v2504
  %2616 = vmatpush2.msra.mxu0 %v2502
  %2617 = vmatprep.subr.mxu0 %v2500
  %2618 = vmatpush2.msra.mxu0 %v2498
  %2619 = vmatprep.subr.mxu0 %v2496
  %2620 = vmatpush2.msra.mxu0 %v2494
  %2621 = vmatprep.subr.mxu0 %v2492
  %2622 = vmatpush2.msra.mxu0 %v2490
  %2623 = vmatprep.subr.mxu0 %v2488
  %2624 = vmatpush2.msra.mxu0 %v2486
  %2625 = vmatprep.subr.mxu0 %v2484
  %2626 = vmatpush2.msra.mxu0 %v2482
  %2627 = vmatprep.subr.mxu0 %v2480
  %2628 = vmatpush2.msra.mxu0 %v2478
  %2629 = vmatprep.subr.mxu0 %v2476
  %2630 = vmatpush2.msra.mxu0 %v2474
  %2631 = vmatprep.subr.mxu0 %v2472
  %2632 = vmatpush2.msra.mxu0 %v2470
  %2633 = vmatprep.subr.mxu0 %v2468
  %2634 = vmatpush2.msra.mxu0 %v2466
  %2635 = vmatprep.subr.mxu0 %v2464
  %2636 = vmatpush2.msra.mxu0 %v2462
  %2637 = vmatprep.subr.mxu0 %v2460
  %2638 = vmatpush2.msra.mxu0 %v2458
  %2639 = vmatprep.subr.mxu0 %v2456
  %2640 = vmatpush2.msra.mxu0 %v2454
  %2641 = vmatprep.subr.mxu0 %v2452
  %2642 = vmatpush2.msra.mxu0 %v2450
  %2643 = vmatprep.subr.mxu0 %v2448
  %2644 = vmatpush2.msra.mxu0 %v2446
  %2645 = vmatprep.subr.mxu0 %v2444
  %2646 = vmatpush2.msra.mxu0 %v2442
  %2647 = vmatprep.mubr.f32.mxu0 %v1810
  %2648 = vmatmul.mubr.f32.gmra.mxu0 %v1808
  %v2649 = vpop.f32.mrf.mxu0
  %v2650 = vadd.f32 0.0, %v2649
  %v2651 = vpop.f32.mrf.mxu0
  %v2652 = vadd.f32 0.0, %v2651
  %2653 = vdwg.mxu0
  %v2654 = vmul.f32 %v2650, %v2580
  %v2655 = vmul.f32 %v2652, %v2582
  %v2658 = vrot.slane %v2654, 4
  %v2659 = vrot.slane %v2655, 4
  %v2662 = vsel %vm30, %v1350, %v2658
  %v2663 = vsel %vm30, %v1351, %v2659
  %2664 = vst [vmem:[%s3] sm:$0xff] %v2662
  %2665 = vst [vmem:[%s3 + $0x8] sm:$0xff] %v2663
  // Predicated region
  $region14: #{toy_model_forward.1} parent=0 // pred_check
    _
  $region15: #{toy_model_forward.1} parent=0 // pred_check_branch
    %2667 = sbr.rel (0) target = $region17
  $region16: #{toy_model_forward.1} parent=0 // pred_region
    _
  $region17: #{toy_model_forward.1} parent=0 // pred_fallthru
    _
  // Predicated region
  $region18: #{toy_model_forward.1} parent=0 // pred_check
    _
  $region19: #{toy_model_forward.1} parent=0 // pred_check_branch
    %2669 = sbr.rel (0) target = $region21
  $region20: #{toy_model_forward.1} parent=0 // pred_region
    _
  $region21: #{toy_model_forward.1} parent=0 // pred_fallthru
    _

</llo_original>
